<compile_context>
chip_gen: v5e
topology: v5e:2x2
jax: 0.10.0
libtpu: 0.0.40
codegen_flags: <defaults>
</compile_context>

<pallas_src>
import math
import jax
import jax.numpy as jnp
from jax.experimental import pallas as pl
from jax.experimental.pallas import tpu as pltpu

# ----------------------------- small RoBERTa config -------------------------
VOCAB = 100
HIDDEN = 32
N_HEADS = 4
HEAD_DIM = HIDDEN // N_HEADS
INTER = 64
N_LAYERS = 2
MAX_POS = 64
LN_EPS = 1e-5
PAD_IDX = 1          # RoBERTa padding_idx

BATCH = 2
SEQ = 8

# lane-dense padded dims (last dim of every stored / projected block = 128)
H_PAD = 128
I_PAD = 128
QKV_PAD = 128        # fused QKV output lanes: [Q 0:32 | K 32:64 | V 64:96 | pad]
NEG_INF = -1e9


# ------------------------------ in-kernel helpers ---------------------------
def _layernorm(x, g, b, lane_valid):
    # x: (S, H_PAD); statistics over the HIDDEN valid lanes only.
    xm = x * lane_valid
    mu = jnp.sum(xm, axis=-1, keepdims=True) * (1.0 / HIDDEN)
    diff = (x - mu) * lane_valid
    var = jnp.sum(diff * diff, axis=-1, keepdims=True) * (1.0 / HIDDEN)
    # gamma/beta are zero in padded lanes, so padded lanes stay exactly 0.
    return diff * jax.lax.rsqrt(var + LN_EPS) * g + b


def _gelu(x):
    # TODO(synk): HF RoBERTa uses exact erf-GELU; tanh approximation used here
    # (matches to ~1e-3) since tanh maps cleanly onto the TPU EUP.
    c = 0.7978845608028654  # sqrt(2/pi)
    return 0.5 * x * (1.0 + jnp.tanh(c * (x + 0.044715 * x * x * x)))


# ------------------------------ fused encoder kernel ------------------------
def roberta_encoder_kernel(
    x_ref, kbias_ref, eg_ref, eb_ref,
    wqkv_ref, bqkv_ref, woh_ref, bo_ref, ln1g_ref, ln1b_ref,
    wi_ref, bi_ref, wo2_ref, bo2_ref, ln2g_ref, ln2b_ref,
    o_ref,
):
    # mask of valid (non-padded) hidden lanes, used by LayerNorm statistics
    lane_valid = (jax.lax.broadcasted_iota(jnp.int32, (1, H_PAD), 1)
                  < HIDDEN).astype(jnp.float32)

    # additive key bias for THIS batch element: (1, 1, SEQ); 0 for valid keys,
    # -1e9 for pad keys.  Cross-sequence masking is implicit (grid = batch).
    bias = kbias_ref[...][None, :, :]

    # embedding LayerNorm
    h = _layernorm(x_ref[...], eg_ref[...], eb_ref[...], lane_valid)   # (S, H_PAD)

    for l in range(N_LAYERS):                      # static unroll over layers
        hb = h.astype(jnp.bfloat16)

        # ---- fused QKV projection: one lane-dense bf16 MXU matmul ----------
        # lanes of qkv: [Q head-major | K head-major | V head-major | 0]
        qkv = jnp.dot(hb, wqkv_ref[l],
                      preferred_element_type=jnp.float32) + bqkv_ref[l]  # (S, 128)

        # split into per-head (N_HEADS, S, HEAD_DIM) tensors (static lane slices)
        q3 = jnp.stack(
            [qkv[:, h0 * HEAD_DIM:(h0 + 1) * HEAD_DIM] for h0 in range(N_HEADS)], 0)
        k3 = jnp.stack(
            [qkv[:, HIDDEN + h0 * HEAD_DIM:HIDDEN + (h0 + 1) * HEAD_DIM]
             for h0 in range(N_HEADS)], 0)
        v3 = jnp.stack(
            [qkv[:, 2 * HIDDEN + h0 * HEAD_DIM:2 * HIDDEN + (h0 + 1) * HEAD_DIM]
             for h0 in range(N_HEADS)], 0)

        # ---- head-batched attention (bf16 MXU feeds, fp32 accumulate) -------
        s = jnp.einsum("hqd,hkd->hqk",
                       q3.astype(jnp.bfloat16), k3.astype(jnp.bfloat16),
                       preferred_element_type=jnp.float32) + bias       # (H, S, S)
        m = jnp.max(s, axis=-1, keepdims=True)
        e = jnp.exp(s - m)
        p = e * pl.reciprocal(jnp.sum(e, axis=-1, keepdims=True), approx=True)

        ctx = jnp.einsum("hqk,hkd->hqd",
                         p.astype(jnp.bfloat16), v3.astype(jnp.bfloat16),
                         preferred_element_type=jnp.float32)            # (H, S, hd)

        # ---- head merge folded into per-head Wo (no reshape / transpose) ----
        attn_h = jnp.einsum("hqd,hde->hqe",
                            ctx.astype(jnp.bfloat16), woh_ref[l],
                            preferred_element_type=jnp.float32)         # (H, S, H_PAD)
        attn = jnp.sum(attn_h, axis=0) + bo_ref[l]                      # (S, H_PAD)

        h1 = _layernorm(h + attn, ln1g_ref[l], ln1b_ref[l], lane_valid)

        # ---- feed-forward (bf16 weights, fp32 accumulate) --------------------
        inter = _gelu(jnp.dot(h1.astype(jnp.bfloat16), wi_ref[l],
                              preferred_element_type=jnp.float32) + bi_ref[l])
        ffn = jnp.dot(inter.astype(jnp.bfloat16), wo2_ref[l],
                      preferred_element_type=jnp.float32) + bo2_ref[l]
        h = _layernorm(h1 + ffn, ln2g_ref[l], ln2b_ref[l], lane_valid)

    o_ref[...] = h.astype(o_ref.dtype)             # (S, H_PAD) lane-dense store


# ------------------------------ parameter init / packing --------------------
def init_params(key):
    def nrm(k, shape, std=0.02):
        return jax.random.normal(k, shape, dtype=jnp.float32) * std

    keys = jax.random.split(key, 4 + N_LAYERS)
    params = {
        "word_emb": nrm(keys[0], (VOCAB, HIDDEN)),
        "pos_emb": nrm(keys[1], (MAX_POS, HIDDEN)),
        "type_emb": nrm(keys[2], (2, HIDDEN)),
        "emb_ln_g": jnp.ones((HIDDEN,), jnp.float32),
        "emb_ln_b": jnp.zeros((HIDDEN,), jnp.float32),
        "layers": [],
    }
    for i in range(N_LAYERS):
        lk = jax.random.split(keys[4 + i], 6)
        params["layers"].append({
            "wq": nrm(lk[0], (HIDDEN, HIDDEN)), "bq": jnp.zeros((HIDDEN,), jnp.float32),
            "wk": nrm(lk[1], (HIDDEN, HIDDEN)), "bk": jnp.zeros((HIDDEN,), jnp.float32),
            "wv": nrm(lk[2], (HIDDEN, HIDDEN)), "bv": jnp.zeros((HIDDEN,), jnp.float32),
            "wo": nrm(lk[3], (HIDDEN, HIDDEN)), "bo": jnp.zeros((HIDDEN,), jnp.float32),
            "ln1g": jnp.ones((HIDDEN,), jnp.float32),
            "ln1b": jnp.zeros((HIDDEN,), jnp.float32),
            "wi": nrm(lk[4], (HIDDEN, INTER)), "bi": jnp.zeros((INTER,), jnp.float32),
            "wo2": nrm(lk[5], (INTER, HIDDEN)), "bo2": jnp.zeros((HIDDEN,), jnp.float32),
            "ln2g": jnp.ones((HIDDEN,), jnp.float32),
            "ln2b": jnp.zeros((HIDDEN,), jnp.float32),
        })
    return params


def pack_params(params):
    """Fuse [Wq|Wk|Wv] along the output-lane axis (scale folded into Q),
    reshape Wo per head, zero-pad everything lane-dense, cast matmul weights
    to bf16, and stack per-layer tensors along a leading N_LAYERS axis."""
    def pad_row(v, n):               # (d,) -> (1, n) f32
        return jnp.pad(v, (0, n - v.shape[0]))[None, :].astype(jnp.float32)

    def pad_mat_bf16(m, r, c):       # (a, b) -> (r, c) bf16
        return jnp.pad(m, ((0, r - m.shape[0]), (0, c - m.shape[1]))
                       ).astype(jnp.bfloat16)

    scale = 1.0 / math.sqrt(HEAD_DIM)
    packed = {
        "eg": pad_row(params["emb_ln_g"], H_PAD),
        "eb": pad_row(params["emb_ln_b"], H_PAD),
    }
    names = ["wqkv", "bqkv", "woh", "bo", "ln1g", "ln1b",
             "wi", "bi", "wo2", "bo2", "ln2g", "ln2b"]
    per = {n: [] for n in names}
    for lp in params["layers"]:
        wqkv = jnp.concatenate([lp["wq"] * scale, lp["wk"], lp["wv"]], axis=1)  # (H, 3H)
        bqkv = jnp.concatenate([lp["bq"] * scale, lp["bk"], lp["bv"]], axis=0)  # (3H,)
        per["wqkv"].append(pad_mat_bf16(wqkv, H_PAD, QKV_PAD))     # (128, 128) bf16
        per["bqkv"].append(pad_row(bqkv, QKV_PAD))                 # (1, 128) f32
        # Wo per head: [h, d, e] = Wo[h*hd + d, e]
        woh = lp["wo"].reshape(N_HEADS, HEAD_DIM, HIDDEN)
        per["woh"].append(jnp.pad(woh, ((0, 0), (0, 0), (0, H_PAD - HIDDEN))
                                  ).astype(jnp.bfloat16))          # (4, 8, 128) bf16
        per["bo"].append(pad_row(lp["bo"], H_PAD))
        per["ln1g"].append(pad_row(lp["ln1g"], H_PAD))
        per["ln1b"].append(pad_row(lp["ln1b"], H_PAD))
        per["wi"].append(pad_mat_bf16(lp["wi"], H_PAD, I_PAD))     # (128, 128) bf16
        per["bi"].append(pad_row(lp["bi"], I_PAD))
        per["wo2"].append(pad_mat_bf16(lp["wo2"], I_PAD, H_PAD))   # (128, 128) bf16
        per["bo2"].append(pad_row(lp["bo2"], H_PAD))
        per["ln2g"].append(pad_row(lp["ln2g"], H_PAD))
        per["ln2b"].append(pad_row(lp["ln2b"], H_PAD))
    for n in names:
        packed[n] = jnp.stack(per[n], axis=0)
    return packed


# ------------------------------ full forward ---------------------------------
def roberta_forward(params, packed, x_ids, segs, mask):
    # Mirrors Roberta.forward: `top_vec, _ = self.model(x, attention_mask=mask)`
    # (segs is unused by the PyTorch forward; token_type_ids default to 0).
    del segs
    B, S = x_ids.shape
    mask_i = mask.astype(jnp.int32)
    # RoBERTa position ids: cumsum over non-pad tokens, offset by padding_idx.
    position_ids = jnp.cumsum(mask_i, axis=1) * mask_i + PAD_IDX

    word = jnp.take(params["word_emb"], x_ids, axis=0)          # glue gather
    pos = jnp.take(params["pos_emb"], position_ids, axis=0)
    typ = params["type_emb"][0][None, None, :]                  # token_type = 0
    emb = (word + pos + typ).astype(jnp.float32)                # (B, S, H)
    emb_p = jnp.pad(emb, ((0, 0), (0, 0), (0, H_PAD - HIDDEN)))  # (B, S, H_PAD)

    # per-batch additive key bias row: 0 for valid keys, -1e9 for pad keys.
    kbias = jnp.where(mask > 0, 0.0, NEG_INF).astype(jnp.float32).reshape(B, 1, S)

    def const_spec(shape):
        return pl.BlockSpec(shape, lambda b: (0,) * len(shape))

    in_specs = [
        pl.BlockSpec((None, S, H_PAD), lambda b: (b, 0, 0)),     # emb (per batch)
        pl.BlockSpec((None, 1, S), lambda b: (b, 0, 0)),         # key bias row
        const_spec((1, H_PAD)),                                  # eg
        const_spec((1, H_PAD)),                                  # eb
        const_spec((N_LAYERS, H_PAD, QKV_PAD)),                  # wqkv (bf16)
        const_spec((N_LAYERS, 1, QKV_PAD)),                      # bqkv
        const_spec((N_LAYERS, N_HEADS, HEAD_DIM, H_PAD)),        # wo per head (bf16)
        const_spec((N_LAYERS, 1, H_PAD)),                        # bo
        const_spec((N_LAYERS, 1, H_PAD)),                        # ln1g
        const_spec((N_LAYERS, 1, H_PAD)),                        # ln1b
        const_spec((N_LAYERS, H_PAD, I_PAD)),                    # wi (bf16)
        const_spec((N_LAYERS, 1, I_PAD)),                        # bi
        const_spec((N_LAYERS, I_PAD, H_PAD)),                    # wo2 (bf16)
        const_spec((N_LAYERS, 1, H_PAD)),                        # bo2
        const_spec((N_LAYERS, 1, H_PAD)),                        # ln2g
        const_spec((N_LAYERS, 1, H_PAD)),                        # ln2b
    ]
    args = (emb_p, kbias, packed["eg"], packed["eb"],
            packed["wqkv"], packed["bqkv"], packed["woh"], packed["bo"],
            packed["ln1g"], packed["ln1b"], packed["wi"], packed["bi"],
            packed["wo2"], packed["bo2"], packed["ln2g"], packed["ln2b"])

    out = pl.pallas_call(
        roberta_encoder_kernel,
        out_shape=jax.ShapeDtypeStruct((B, S, H_PAD), jnp.float32),
        grid=(B,),                                   # one program per sequence
        in_specs=in_specs,
        out_specs=pl.BlockSpec((None, S, H_PAD), lambda b: (b, 0, 0)),
        compiler_params=pltpu.CompilerParams(
            dimension_semantics=("parallel",),       # v7x: shard across both TCs
            vmem_limit_bytes=32 * 1024 * 1024),
    )(*args)

    return out[:, :, :HIDDEN]                        # top_vec: (B, S, H)


# ------------------------------ main ------------------------------------------
if __name__ == "__main__":
    key = jax.random.PRNGKey(0)
    pkey, xkey = jax.random.split(key)
    params = init_params(pkey)
    packed = pack_params(params)

    # token ids in [0, VOCAB); last two positions of example 1 are padding
    x_ids = jax.random.randint(xkey, (BATCH, SEQ), 0, VOCAB, dtype=jnp.int32)
    mask = jnp.array([[1, 1, 1, 1, 1, 1, 1, 1],
                      [1, 1, 1, 1, 1, 1, 0, 0]], dtype=jnp.float32)
    x_ids = jnp.where(mask.astype(bool), x_ids, PAD_IDX)
    segs = jnp.zeros((BATCH, SEQ), dtype=jnp.int32)  # ignored, as in PyTorch forward

    top_vec = roberta_forward(params, packed, x_ids, segs, mask)
    jax.block_until_ready(top_vec)
    assert top_vec.shape == (BATCH, SEQ, HIDDEN)
    print("KERNEL_OK")
</pallas_src>

<mosaic_0001>
module attributes {stable_mosaic.version = 11 : i64} {
  func.func @roberta_encoder_kernel(%arg0: i32, %arg1: memref<1x8x128xf32, #tpu.memory_space<vmem>>, %arg2: memref<1x1x8xf32, #tpu.memory_space<vmem>>, %arg3: memref<1x128xf32, #tpu.memory_space<vmem>>, %arg4: memref<1x128xf32, #tpu.memory_space<vmem>>, %arg5: memref<2x128x128xbf16, #tpu.memory_space<vmem>>, %arg6: memref<2x1x128xf32, #tpu.memory_space<vmem>>, %arg7: memref<2x4x8x128xbf16, #tpu.memory_space<vmem>>, %arg8: memref<2x1x128xf32, #tpu.memory_space<vmem>>, %arg9: memref<2x1x128xf32, #tpu.memory_space<vmem>>, %arg10: memref<2x1x128xf32, #tpu.memory_space<vmem>>, %arg11: memref<2x128x128xbf16, #tpu.memory_space<vmem>>, %arg12: memref<2x1x128xf32, #tpu.memory_space<vmem>>, %arg13: memref<2x128x128xbf16, #tpu.memory_space<vmem>>, %arg14: memref<2x1x128xf32, #tpu.memory_space<vmem>>, %arg15: memref<2x1x128xf32, #tpu.memory_space<vmem>>, %arg16: memref<2x1x128xf32, #tpu.memory_space<vmem>>, %arg17: memref<1x8x128xf32, #tpu.memory_space<vmem>>) attributes {dimension_semantics = [#tpu.dimension_semantics<parallel>], iteration_bounds = array<i64: 2>, scalar_prefetch = 0 : i64, scratch_operands = 0 : i64, tpu.core_type = #tpu.core_type<tc>, window_params = [{transform_indices = @transform_0, window_bounds = array<i64: 1, 8, 128>}, {transform_indices = @transform_1, window_bounds = array<i64: 1, 1, 8>}, {pipeline_mode = #tpu.pipeline_mode<synchronous>, transform_indices = @transform_2, window_bounds = array<i64: 1, 128>}, {pipeline_mode = #tpu.pipeline_mode<synchronous>, transform_indices = @transform_3, window_bounds = array<i64: 1, 128>}, {pipeline_mode = #tpu.pipeline_mode<synchronous>, transform_indices = @transform_4, window_bounds = array<i64: 2, 128, 128>}, {pipeline_mode = #tpu.pipeline_mode<synchronous>, transform_indices = @transform_5, window_bounds = array<i64: 2, 1, 128>}, {pipeline_mode = #tpu.pipeline_mode<synchronous>, transform_indices = @transform_6, window_bounds = array<i64: 2, 4, 8, 128>}, {pipeline_mode = #tpu.pipeline_mode<synchronous>, transform_indices = @transform_7, window_bounds = array<i64: 2, 1, 128>}, {pipeline_mode = #tpu.pipeline_mode<synchronous>, transform_indices = @transform_8, window_bounds = array<i64: 2, 1, 128>}, {pipeline_mode = #tpu.pipeline_mode<synchronous>, transform_indices = @transform_9, window_bounds = array<i64: 2, 1, 128>}, {pipeline_mode = #tpu.pipeline_mode<synchronous>, transform_indices = @transform_10, window_bounds = array<i64: 2, 128, 128>}, {pipeline_mode = #tpu.pipeline_mode<synchronous>, transform_indices = @transform_11, window_bounds = array<i64: 2, 1, 128>}, {pipeline_mode = #tpu.pipeline_mode<synchronous>, transform_indices = @transform_12, window_bounds = array<i64: 2, 128, 128>}, {pipeline_mode = #tpu.pipeline_mode<synchronous>, transform_indices = @transform_13, window_bounds = array<i64: 2, 1, 128>}, {pipeline_mode = #tpu.pipeline_mode<synchronous>, transform_indices = @transform_14, window_bounds = array<i64: 2, 1, 128>}, {pipeline_mode = #tpu.pipeline_mode<synchronous>, transform_indices = @transform_15, window_bounds = array<i64: 2, 1, 128>}, {transform_indices = @transform_16, window_bounds = array<i64: 1, 8, 128>}]} {
    %0 = tpu.iota {dimensions = array<i32: 1>} : vector<1x128xi32>
    %c32_i32 = arith.constant 32 : i32
    %1 = vector.broadcast %c32_i32 : i32 to vector<1x128xi32>
    %2 = arith.cmpi slt, %0, %1 : vector<1x128xi32>
    %3 = arith.extui %2 : vector<1x128xi1> to vector<1x128xi32>
    %4 = arith.sitofp %3 : vector<1x128xi32> to vector<1x128xf32>
    %c0 = arith.constant 0 : index
    %c0_0 = arith.constant 0 : index
    %c0_1 = arith.constant 0 : index
    %5 = vector.load %arg2[%c0, %c0_0, %c0_1] : memref<1x1x8xf32, #tpu.memory_space<vmem>>, vector<1x1x8xf32>
    %6 = vector.shape_cast %5 : vector<1x1x8xf32> to vector<1x8xf32>
    %7 = vector.shape_cast %6 : vector<1x8xf32> to vector<1x1x8xf32>
    %c0_2 = arith.constant 0 : index
    %c0_3 = arith.constant 0 : index
    %c0_4 = arith.constant 0 : index
    %8 = vector.load %arg1[%c0_2, %c0_3, %c0_4] : memref<1x8x128xf32, #tpu.memory_space<vmem>>, vector<1x8x128xf32>
    %9 = vector.shape_cast %8 : vector<1x8x128xf32> to vector<8x128xf32>
    %c0_5 = arith.constant 0 : index
    %c0_6 = arith.constant 0 : index
    %10 = vector.load %arg3[%c0_5, %c0_6] : memref<1x128xf32, #tpu.memory_space<vmem>>, vector<1x128xf32>
    %c0_7 = arith.constant 0 : index
    %c0_8 = arith.constant 0 : index
    %11 = vector.load %arg4[%c0_7, %c0_8] : memref<1x128xf32, #tpu.memory_space<vmem>>, vector<1x128xf32>
    %12 = vector.broadcast %4 : vector<1x128xf32> to vector<8x128xf32>
    %13 = arith.mulf %9, %12 : vector<8x128xf32>
    %cst = arith.constant dense<0.000000e+00> : vector<8xf32>
    %14 = vector.multi_reduction <add>, %13, %cst [1] : vector<8x128xf32> to vector<8xf32>
    %15 = vector.shape_cast %14 : vector<8xf32> to vector<8x1xf32>
    %cst_9 = arith.constant 3.125000e-02 : f32
    %16 = vector.broadcast %cst_9 : f32 to vector<8x1xf32>
    %17 = arith.mulf %15, %16 : vector<8x1xf32>
    %18 = vector.broadcast %17 : vector<8x1xf32> to vector<8x128xf32>
    %19 = arith.subf %9, %18 : vector<8x128xf32>
    %20 = vector.broadcast %4 : vector<1x128xf32> to vector<8x128xf32>
    %21 = arith.mulf %19, %20 : vector<8x128xf32>
    %22 = arith.mulf %21, %21 : vector<8x128xf32>
    %cst_10 = arith.constant dense<0.000000e+00> : vector<8xf32>
    %23 = vector.multi_reduction <add>, %22, %cst_10 [1] : vector<8x128xf32> to vector<8xf32>
    %24 = vector.shape_cast %23 : vector<8xf32> to vector<8x1xf32>
    %cst_11 = arith.constant 3.125000e-02 : f32
    %25 = vector.broadcast %cst_11 : f32 to vector<8x1xf32>
    %26 = arith.mulf %24, %25 : vector<8x1xf32>
    %cst_12 = arith.constant 9.99999974E-6 : f32
    %27 = vector.broadcast %cst_12 : f32 to vector<8x1xf32>
    %28 = arith.addf %26, %27 : vector<8x1xf32>
    %29 = math.rsqrt %28 : vector<8x1xf32>
    %30 = vector.broadcast %29 : vector<8x1xf32> to vector<8x128xf32>
    %31 = arith.mulf %21, %30 : vector<8x128xf32>
    %32 = vector.broadcast %10 : vector<1x128xf32> to vector<8x128xf32>
    %33 = arith.mulf %31, %32 : vector<8x128xf32>
    %34 = vector.broadcast %11 : vector<1x128xf32> to vector<8x128xf32>
    %35 = arith.addf %33, %34 : vector<8x128xf32>
    %36 = arith.truncf %35 : vector<8x128xf32> to vector<8x128xbf16>
    %c0_13 = arith.constant 0 : index
    %c0_14 = arith.constant 0 : index
    %c0_15 = arith.constant 0 : index
    %37 = vector.load %arg5[%c0_13, %c0_14, %c0_15] : memref<2x128x128xbf16, #tpu.memory_space<vmem>>, vector<1x128x128xbf16>
    %38 = vector.shape_cast %37 : vector<1x128x128xbf16> to vector<128x128xbf16>
    %cst_16 = arith.constant dense<0.000000e+00> : vector<8x128xf32>
    %39 = tpu.matmul %36, %38, %cst_16 {dimension_numbers = #tpu.dot_dimension_numbers<[1], [0], [0], [1], [0, 0, 1, 1], [], []>} : vector<8x128xbf16>, vector<128x128xbf16>, vector<8x128xf32> -> vector<8x128xf32>
    %c0_17 = arith.constant 0 : index
    %c0_18 = arith.constant 0 : index
    %c0_19 = arith.constant 0 : index
    %40 = vector.load %arg6[%c0_17, %c0_18, %c0_19] : memref<2x1x128xf32, #tpu.memory_space<vmem>>, vector<1x1x128xf32>
    %41 = vector.shape_cast %40 : vector<1x1x128xf32> to vector<1x128xf32>
    %42 = vector.broadcast %41 : vector<1x128xf32> to vector<8x128xf32>
    %43 = arith.addf %39, %42 : vector<8x128xf32>
    %44 = vector.extract_strided_slice %43 {offsets = [0, 0], sizes = [8, 8], strides = [1, 1]} : vector<8x128xf32> to vector<8x8xf32>
    %45 = vector.extract_strided_slice %43 {offsets = [0, 8], sizes = [8, 8], strides = [1, 1]} : vector<8x128xf32> to vector<8x8xf32>
    %46 = vector.extract_strided_slice %43 {offsets = [0, 16], sizes = [8, 8], strides = [1, 1]} : vector<8x128xf32> to vector<8x8xf32>
    %47 = vector.extract_strided_slice %43 {offsets = [0, 24], sizes = [8, 8], strides = [1, 1]} : vector<8x128xf32> to vector<8x8xf32>
    %48 = vector.shape_cast %44 : vector<8x8xf32> to vector<1x8x8xf32>
    %49 = vector.shape_cast %45 : vector<8x8xf32> to vector<1x8x8xf32>
    %50 = vector.shape_cast %46 : vector<8x8xf32> to vector<1x8x8xf32>
    %51 = vector.shape_cast %47 : vector<8x8xf32> to vector<1x8x8xf32>
    %52 = tpu.concatenate %48, %49, %50, %51 in 0 : vector<1x8x8xf32>, vector<1x8x8xf32>, vector<1x8x8xf32>, vector<1x8x8xf32> -> vector<4x8x8xf32>
    %53 = vector.extract_strided_slice %43 {offsets = [0, 32], sizes = [8, 8], strides = [1, 1]} : vector<8x128xf32> to vector<8x8xf32>
    %54 = vector.extract_strided_slice %43 {offsets = [0, 40], sizes = [8, 8], strides = [1, 1]} : vector<8x128xf32> to vector<8x8xf32>
    %55 = vector.extract_strided_slice %43 {offsets = [0, 48], sizes = [8, 8], strides = [1, 1]} : vector<8x128xf32> to vector<8x8xf32>
    %56 = vector.extract_strided_slice %43 {offsets = [0, 56], sizes = [8, 8], strides = [1, 1]} : vector<8x128xf32> to vector<8x8xf32>
    %57 = vector.shape_cast %53 : vector<8x8xf32> to vector<1x8x8xf32>
    %58 = vector.shape_cast %54 : vector<8x8xf32> to vector<1x8x8xf32>
    %59 = vector.shape_cast %55 : vector<8x8xf32> to vector<1x8x8xf32>
    %60 = vector.shape_cast %56 : vector<8x8xf32> to vector<1x8x8xf32>
    %61 = tpu.concatenate %57, %58, %59, %60 in 0 : vector<1x8x8xf32>, vector<1x8x8xf32>, vector<1x8x8xf32>, vector<1x8x8xf32> -> vector<4x8x8xf32>
    %62 = vector.extract_strided_slice %43 {offsets = [0, 64], sizes = [8, 8], strides = [1, 1]} : vector<8x128xf32> to vector<8x8xf32>
    %63 = vector.extract_strided_slice %43 {offsets = [0, 72], sizes = [8, 8], strides = [1, 1]} : vector<8x128xf32> to vector<8x8xf32>
    %64 = vector.extract_strided_slice %43 {offsets = [0, 80], sizes = [8, 8], strides = [1, 1]} : vector<8x128xf32> to vector<8x8xf32>
    %65 = vector.extract_strided_slice %43 {offsets = [0, 88], sizes = [8, 8], strides = [1, 1]} : vector<8x128xf32> to vector<8x8xf32>
    %66 = vector.shape_cast %62 : vector<8x8xf32> to vector<1x8x8xf32>
    %67 = vector.shape_cast %63 : vector<8x8xf32> to vector<1x8x8xf32>
    %68 = vector.shape_cast %64 : vector<8x8xf32> to vector<1x8x8xf32>
    %69 = vector.shape_cast %65 : vector<8x8xf32> to vector<1x8x8xf32>
    %70 = tpu.concatenate %66, %67, %68, %69 in 0 : vector<1x8x8xf32>, vector<1x8x8xf32>, vector<1x8x8xf32>, vector<1x8x8xf32> -> vector<4x8x8xf32>
    %71 = arith.truncf %52 : vector<4x8x8xf32> to vector<4x8x8xbf16>
    %72 = arith.truncf %61 : vector<4x8x8xf32> to vector<4x8x8xbf16>
    "tpu.trace_start"() <{level = 10 : i32, message = "hqd,hkd->hqk"}> : () -> ()
    %cst_20 = arith.constant dense<0.000000e+00> : vector<4x8x8xf32>
    %73 = tpu.matmul %71, %72, %cst_20 {dimension_numbers = #tpu.dot_dimension_numbers<[2], [2], [1], [1], [0, 0, 0, 1, 1, 1], [0], [0]>} : vector<4x8x8xbf16>, vector<4x8x8xbf16>, vector<4x8x8xf32> -> vector<4x8x8xf32>
    "tpu.trace_stop"() : () -> ()
    %74 = vector.broadcast %7 : vector<1x1x8xf32> to vector<4x8x8xf32>
    %75 = arith.addf %73, %74 : vector<4x8x8xf32>
    %cst_21 = arith.constant dense<0xFF800000> : vector<4x8xf32>
    %76 = vector.multi_reduction <maximumf>, %75, %cst_21 [2] : vector<4x8x8xf32> to vector<4x8xf32>
    %77 = vector.shape_cast %76 : vector<4x8xf32> to vector<4x8x1xf32>
    %78 = vector.broadcast %77 : vector<4x8x1xf32> to vector<4x8x8xf32>
    %79 = arith.subf %75, %78 : vector<4x8x8xf32>
    %80 = math.exp %79 : vector<4x8x8xf32>
    %cst_22 = arith.constant dense<0.000000e+00> : vector<4x8xf32>
    %81 = vector.multi_reduction <add>, %80, %cst_22 [2] : vector<4x8x8xf32> to vector<4x8xf32>
    %82 = vector.shape_cast %81 : vector<4x8xf32> to vector<4x8x1xf32>
    %83 = tpu.reciprocal %82 {approx = true} : vector<4x8x1xf32> -> vector<4x8x1xf32>
    %84 = vector.broadcast %83 : vector<4x8x1xf32> to vector<4x8x8xf32>
    %85 = arith.mulf %80, %84 : vector<4x8x8xf32>
    %86 = arith.truncf %85 : vector<4x8x8xf32> to vector<4x8x8xbf16>
    %87 = arith.truncf %70 : vector<4x8x8xf32> to vector<4x8x8xbf16>
    "tpu.trace_start"() <{level = 10 : i32, message = "hqk,hkd->hqd"}> : () -> ()
    %cst_23 = arith.constant dense<0.000000e+00> : vector<4x8x8xf32>
    %88 = tpu.matmul %86, %87, %cst_23 {dimension_numbers = #tpu.dot_dimension_numbers<[2], [1], [1], [2], [0, 0, 0, 1, 1, 2], [0], [0]>} : vector<4x8x8xbf16>, vector<4x8x8xbf16>, vector<4x8x8xf32> -> vector<4x8x8xf32>
    "tpu.trace_stop"() : () -> ()
    %89 = arith.truncf %88 : vector<4x8x8xf32> to vector<4x8x8xbf16>
    %c0_24 = arith.constant 0 : index
    %c0_25 = arith.constant 0 : index
    %c0_26 = arith.constant 0 : index
    %c0_27 = arith.constant 0 : index
    %90 = vector.load %arg7[%c0_24, %c0_25, %c0_26, %c0_27] : memref<2x4x8x128xbf16, #tpu.memory_space<vmem>>, vector<1x4x8x128xbf16>
    %91 = vector.shape_cast %90 : vector<1x4x8x128xbf16> to vector<4x8x128xbf16>
    "tpu.trace_start"() <{level = 10 : i32, message = "hqd,hde->hqe"}> : () -> ()
    %cst_28 = arith.constant dense<0.000000e+00> : vector<4x8x128xf32>
    %92 = tpu.matmul %89, %91, %cst_28 {dimension_numbers = #tpu.dot_dimension_numbers<[2], [1], [1], [2], [0, 0, 0, 1, 1, 2], [0], [0]>} : vector<4x8x8xbf16>, vector<4x8x128xbf16>, vector<4x8x128xf32> -> vector<4x8x128xf32>
    "tpu.trace_stop"() : () -> ()
    %cst_29 = arith.constant dense<0.000000e+00> : vector<8x128xf32>
    %93 = vector.multi_reduction <add>, %92, %cst_29 [0] : vector<4x8x128xf32> to vector<8x128xf32>
    %c0_30 = arith.constant 0 : index
    %c0_31 = arith.constant 0 : index
    %c0_32 = arith.constant 0 : index
    %94 = vector.load %arg8[%c0_30, %c0_31, %c0_32] : memref<2x1x128xf32, #tpu.memory_space<vmem>>, vector<1x1x128xf32>
    %95 = vector.shape_cast %94 : vector<1x1x128xf32> to vector<1x128xf32>
    %96 = vector.broadcast %95 : vector<1x128xf32> to vector<8x128xf32>
    %97 = arith.addf %93, %96 : vector<8x128xf32>
    %98 = arith.addf %35, %97 : vector<8x128xf32>
    %c0_33 = arith.constant 0 : index
    %c0_34 = arith.constant 0 : index
    %c0_35 = arith.constant 0 : index
    %99 = vector.load %arg9[%c0_33, %c0_34, %c0_35] : memref<2x1x128xf32, #tpu.memory_space<vmem>>, vector<1x1x128xf32>
    %100 = vector.shape_cast %99 : vector<1x1x128xf32> to vector<1x128xf32>
    %c0_36 = arith.constant 0 : index
    %c0_37 = arith.constant 0 : index
    %c0_38 = arith.constant 0 : index
    %101 = vector.load %arg10[%c0_36, %c0_37, %c0_38] : memref<2x1x128xf32, #tpu.memory_space<vmem>>, vector<1x1x128xf32>
    %102 = vector.shape_cast %101 : vector<1x1x128xf32> to vector<1x128xf32>
    %103 = vector.broadcast %4 : vector<1x128xf32> to vector<8x128xf32>
    %104 = arith.mulf %98, %103 : vector<8x128xf32>
    %cst_39 = arith.constant dense<0.000000e+00> : vector<8xf32>
    %105 = vector.multi_reduction <add>, %104, %cst_39 [1] : vector<8x128xf32> to vector<8xf32>
    %106 = vector.shape_cast %105 : vector<8xf32> to vector<8x1xf32>
    %cst_40 = arith.constant 3.125000e-02 : f32
    %107 = vector.broadcast %cst_40 : f32 to vector<8x1xf32>
    %108 = arith.mulf %106, %107 : vector<8x1xf32>
    %109 = vector.broadcast %108 : vector<8x1xf32> to vector<8x128xf32>
    %110 = arith.subf %98, %109 : vector<8x128xf32>
    %111 = vector.broadcast %4 : vector<1x128xf32> to vector<8x128xf32>
    %112 = arith.mulf %110, %111 : vector<8x128xf32>
    %113 = arith.mulf %112, %112 : vector<8x128xf32>
    %cst_41 = arith.constant dense<0.000000e+00> : vector<8xf32>
    %114 = vector.multi_reduction <add>, %113, %cst_41 [1] : vector<8x128xf32> to vector<8xf32>
    %115 = vector.shape_cast %114 : vector<8xf32> to vector<8x1xf32>
    %cst_42 = arith.constant 3.125000e-02 : f32
    %116 = vector.broadcast %cst_42 : f32 to vector<8x1xf32>
    %117 = arith.mulf %115, %116 : vector<8x1xf32>
    %cst_43 = arith.constant 9.99999974E-6 : f32
    %118 = vector.broadcast %cst_43 : f32 to vector<8x1xf32>
    %119 = arith.addf %117, %118 : vector<8x1xf32>
    %120 = math.rsqrt %119 : vector<8x1xf32>
    %121 = vector.broadcast %120 : vector<8x1xf32> to vector<8x128xf32>
    %122 = arith.mulf %112, %121 : vector<8x128xf32>
    %123 = vector.broadcast %100 : vector<1x128xf32> to vector<8x128xf32>
    %124 = arith.mulf %122, %123 : vector<8x128xf32>
    %125 = vector.broadcast %102 : vector<1x128xf32> to vector<8x128xf32>
    %126 = arith.addf %124, %125 : vector<8x128xf32>
    %127 = arith.truncf %126 : vector<8x128xf32> to vector<8x128xbf16>
    %c0_44 = arith.constant 0 : index
    %c0_45 = arith.constant 0 : index
    %c0_46 = arith.constant 0 : index
    %128 = vector.load %arg11[%c0_44, %c0_45, %c0_46] : memref<2x128x128xbf16, #tpu.memory_space<vmem>>, vector<1x128x128xbf16>
    %129 = vector.shape_cast %128 : vector<1x128x128xbf16> to vector<128x128xbf16>
    %cst_47 = arith.constant dense<0.000000e+00> : vector<8x128xf32>
    %130 = tpu.matmul %127, %129, %cst_47 {dimension_numbers = #tpu.dot_dimension_numbers<[1], [0], [0], [1], [0, 0, 1, 1], [], []>} : vector<8x128xbf16>, vector<128x128xbf16>, vector<8x128xf32> -> vector<8x128xf32>
    %c0_48 = arith.constant 0 : index
    %c0_49 = arith.constant 0 : index
    %c0_50 = arith.constant 0 : index
    %131 = vector.load %arg12[%c0_48, %c0_49, %c0_50] : memref<2x1x128xf32, #tpu.memory_space<vmem>>, vector<1x1x128xf32>
    %132 = vector.shape_cast %131 : vector<1x1x128xf32> to vector<1x128xf32>
    %133 = vector.broadcast %132 : vector<1x128xf32> to vector<8x128xf32>
    %134 = arith.addf %130, %133 : vector<8x128xf32>
    %cst_51 = arith.constant 5.000000e-01 : f32
    %135 = vector.broadcast %cst_51 : f32 to vector<8x128xf32>
    %136 = arith.mulf %135, %134 : vector<8x128xf32>
    %cst_52 = arith.constant 4.471500e-02 : f32
    %137 = vector.broadcast %cst_52 : f32 to vector<8x128xf32>
    %138 = arith.mulf %137, %134 : vector<8x128xf32>
    %139 = arith.mulf %138, %134 : vector<8x128xf32>
    %140 = arith.mulf %139, %134 : vector<8x128xf32>
    %141 = arith.addf %134, %140 : vector<8x128xf32>
    %cst_53 = arith.constant 0.797884583 : f32
    %142 = vector.broadcast %cst_53 : f32 to vector<8x128xf32>
    %143 = arith.mulf %142, %141 : vector<8x128xf32>
    %144 = math.tanh %143 : vector<8x128xf32>
    %cst_54 = arith.constant 1.000000e+00 : f32
    %145 = vector.broadcast %cst_54 : f32 to vector<8x128xf32>
    %146 = arith.addf %145, %144 : vector<8x128xf32>
    %147 = arith.mulf %136, %146 : vector<8x128xf32>
    %148 = arith.truncf %147 : vector<8x128xf32> to vector<8x128xbf16>
    %c0_55 = arith.constant 0 : index
    %c0_56 = arith.constant 0 : index
    %c0_57 = arith.constant 0 : index
    %149 = vector.load %arg13[%c0_55, %c0_56, %c0_57] : memref<2x128x128xbf16, #tpu.memory_space<vmem>>, vector<1x128x128xbf16>
    %150 = vector.shape_cast %149 : vector<1x128x128xbf16> to vector<128x128xbf16>
    %cst_58 = arith.constant dense<0.000000e+00> : vector<8x128xf32>
    %151 = tpu.matmul %148, %150, %cst_58 {dimension_numbers = #tpu.dot_dimension_numbers<[1], [0], [0], [1], [0, 0, 1, 1], [], []>} : vector<8x128xbf16>, vector<128x128xbf16>, vector<8x128xf32> -> vector<8x128xf32>
    %c0_59 = arith.constant 0 : index
    %c0_60 = arith.constant 0 : index
    %c0_61 = arith.constant 0 : index
    %152 = vector.load %arg14[%c0_59, %c0_60, %c0_61] : memref<2x1x128xf32, #tpu.memory_space<vmem>>, vector<1x1x128xf32>
    %153 = vector.shape_cast %152 : vector<1x1x128xf32> to vector<1x128xf32>
    %154 = vector.broadcast %153 : vector<1x128xf32> to vector<8x128xf32>
    %155 = arith.addf %151, %154 : vector<8x128xf32>
    %156 = arith.addf %126, %155 : vector<8x128xf32>
    %c0_62 = arith.constant 0 : index
    %c0_63 = arith.constant 0 : index
    %c0_64 = arith.constant 0 : index
    %157 = vector.load %arg15[%c0_62, %c0_63, %c0_64] : memref<2x1x128xf32, #tpu.memory_space<vmem>>, vector<1x1x128xf32>
    %158 = vector.shape_cast %157 : vector<1x1x128xf32> to vector<1x128xf32>
    %c0_65 = arith.constant 0 : index
    %c0_66 = arith.constant 0 : index
    %c0_67 = arith.constant 0 : index
    %159 = vector.load %arg16[%c0_65, %c0_66, %c0_67] : memref<2x1x128xf32, #tpu.memory_space<vmem>>, vector<1x1x128xf32>
    %160 = vector.shape_cast %159 : vector<1x1x128xf32> to vector<1x128xf32>
    %161 = vector.broadcast %4 : vector<1x128xf32> to vector<8x128xf32>
    %162 = arith.mulf %156, %161 : vector<8x128xf32>
    %cst_68 = arith.constant dense<0.000000e+00> : vector<8xf32>
    %163 = vector.multi_reduction <add>, %162, %cst_68 [1] : vector<8x128xf32> to vector<8xf32>
    %164 = vector.shape_cast %163 : vector<8xf32> to vector<8x1xf32>
    %cst_69 = arith.constant 3.125000e-02 : f32
    %165 = vector.broadcast %cst_69 : f32 to vector<8x1xf32>
    %166 = arith.mulf %164, %165 : vector<8x1xf32>
    %167 = vector.broadcast %166 : vector<8x1xf32> to vector<8x128xf32>
    %168 = arith.subf %156, %167 : vector<8x128xf32>
    %169 = vector.broadcast %4 : vector<1x128xf32> to vector<8x128xf32>
    %170 = arith.mulf %168, %169 : vector<8x128xf32>
    %171 = arith.mulf %170, %170 : vector<8x128xf32>
    %cst_70 = arith.constant dense<0.000000e+00> : vector<8xf32>
    %172 = vector.multi_reduction <add>, %171, %cst_70 [1] : vector<8x128xf32> to vector<8xf32>
    %173 = vector.shape_cast %172 : vector<8xf32> to vector<8x1xf32>
    %cst_71 = arith.constant 3.125000e-02 : f32
    %174 = vector.broadcast %cst_71 : f32 to vector<8x1xf32>
    %175 = arith.mulf %173, %174 : vector<8x1xf32>
    %cst_72 = arith.constant 9.99999974E-6 : f32
    %176 = vector.broadcast %cst_72 : f32 to vector<8x1xf32>
    %177 = arith.addf %175, %176 : vector<8x1xf32>
    %178 = math.rsqrt %177 : vector<8x1xf32>
    %179 = vector.broadcast %178 : vector<8x1xf32> to vector<8x128xf32>
    %180 = arith.mulf %170, %179 : vector<8x128xf32>
    %181 = vector.broadcast %158 : vector<1x128xf32> to vector<8x128xf32>
    %182 = arith.mulf %180, %181 : vector<8x128xf32>
    %183 = vector.broadcast %160 : vector<1x128xf32> to vector<8x128xf32>
    %184 = arith.addf %182, %183 : vector<8x128xf32>
    %185 = arith.truncf %184 : vector<8x128xf32> to vector<8x128xbf16>
    %c1 = arith.constant 1 : index
    %c0_73 = arith.constant 0 : index
    %c0_74 = arith.constant 0 : index
    %186 = vector.load %arg5[%c1, %c0_73, %c0_74] : memref<2x128x128xbf16, #tpu.memory_space<vmem>>, vector<1x128x128xbf16>
    %187 = vector.shape_cast %186 : vector<1x128x128xbf16> to vector<128x128xbf16>
    %cst_75 = arith.constant dense<0.000000e+00> : vector<8x128xf32>
    %188 = tpu.matmul %185, %187, %cst_75 {dimension_numbers = #tpu.dot_dimension_numbers<[1], [0], [0], [1], [0, 0, 1, 1], [], []>} : vector<8x128xbf16>, vector<128x128xbf16>, vector<8x128xf32> -> vector<8x128xf32>
    %c1_76 = arith.constant 1 : index
    %c0_77 = arith.constant 0 : index
    %c0_78 = arith.constant 0 : index
    %189 = vector.load %arg6[%c1_76, %c0_77, %c0_78] : memref<2x1x128xf32, #tpu.memory_space<vmem>>, vector<1x1x128xf32>
    %190 = vector.shape_cast %189 : vector<1x1x128xf32> to vector<1x128xf32>
    %191 = vector.broadcast %190 : vector<1x128xf32> to vector<8x128xf32>
    %192 = arith.addf %188, %191 : vector<8x128xf32>
    %193 = vector.extract_strided_slice %192 {offsets = [0, 0], sizes = [8, 8], strides = [1, 1]} : vector<8x128xf32> to vector<8x8xf32>
    %194 = vector.extract_strided_slice %192 {offsets = [0, 8], sizes = [8, 8], strides = [1, 1]} : vector<8x128xf32> to vector<8x8xf32>
    %195 = vector.extract_strided_slice %192 {offsets = [0, 16], sizes = [8, 8], strides = [1, 1]} : vector<8x128xf32> to vector<8x8xf32>
    %196 = vector.extract_strided_slice %192 {offsets = [0, 24], sizes = [8, 8], strides = [1, 1]} : vector<8x128xf32> to vector<8x8xf32>
    %197 = vector.shape_cast %193 : vector<8x8xf32> to vector<1x8x8xf32>
    %198 = vector.shape_cast %194 : vector<8x8xf32> to vector<1x8x8xf32>
    %199 = vector.shape_cast %195 : vector<8x8xf32> to vector<1x8x8xf32>
    %200 = vector.shape_cast %196 : vector<8x8xf32> to vector<1x8x8xf32>
    %201 = tpu.concatenate %197, %198, %199, %200 in 0 : vector<1x8x8xf32>, vector<1x8x8xf32>, vector<1x8x8xf32>, vector<1x8x8xf32> -> vector<4x8x8xf32>
    %202 = vector.extract_strided_slice %192 {offsets = [0, 32], sizes = [8, 8], strides = [1, 1]} : vector<8x128xf32> to vector<8x8xf32>
    %203 = vector.extract_strided_slice %192 {offsets = [0, 40], sizes = [8, 8], strides = [1, 1]} : vector<8x128xf32> to vector<8x8xf32>
    %204 = vector.extract_strided_slice %192 {offsets = [0, 48], sizes = [8, 8], strides = [1, 1]} : vector<8x128xf32> to vector<8x8xf32>
    %205 = vector.extract_strided_slice %192 {offsets = [0, 56], sizes = [8, 8], strides = [1, 1]} : vector<8x128xf32> to vector<8x8xf32>
    %206 = vector.shape_cast %202 : vector<8x8xf32> to vector<1x8x8xf32>
    %207 = vector.shape_cast %203 : vector<8x8xf32> to vector<1x8x8xf32>
    %208 = vector.shape_cast %204 : vector<8x8xf32> to vector<1x8x8xf32>
    %209 = vector.shape_cast %205 : vector<8x8xf32> to vector<1x8x8xf32>
    %210 = tpu.concatenate %206, %207, %208, %209 in 0 : vector<1x8x8xf32>, vector<1x8x8xf32>, vector<1x8x8xf32>, vector<1x8x8xf32> -> vector<4x8x8xf32>
    %211 = vector.extract_strided_slice %192 {offsets = [0, 64], sizes = [8, 8], strides = [1, 1]} : vector<8x128xf32> to vector<8x8xf32>
    %212 = vector.extract_strided_slice %192 {offsets = [0, 72], sizes = [8, 8], strides = [1, 1]} : vector<8x128xf32> to vector<8x8xf32>
    %213 = vector.extract_strided_slice %192 {offsets = [0, 80], sizes = [8, 8], strides = [1, 1]} : vector<8x128xf32> to vector<8x8xf32>
    %214 = vector.extract_strided_slice %192 {offsets = [0, 88], sizes = [8, 8], strides = [1, 1]} : vector<8x128xf32> to vector<8x8xf32>
    %215 = vector.shape_cast %211 : vector<8x8xf32> to vector<1x8x8xf32>
    %216 = vector.shape_cast %212 : vector<8x8xf32> to vector<1x8x8xf32>
    %217 = vector.shape_cast %213 : vector<8x8xf32> to vector<1x8x8xf32>
    %218 = vector.shape_cast %214 : vector<8x8xf32> to vector<1x8x8xf32>
    %219 = tpu.concatenate %215, %216, %217, %218 in 0 : vector<1x8x8xf32>, vector<1x8x8xf32>, vector<1x8x8xf32>, vector<1x8x8xf32> -> vector<4x8x8xf32>
    %220 = arith.truncf %201 : vector<4x8x8xf32> to vector<4x8x8xbf16>
    %221 = arith.truncf %210 : vector<4x8x8xf32> to vector<4x8x8xbf16>
    "tpu.trace_start"() <{level = 10 : i32, message = "hqd,hkd->hqk"}> : () -> ()
    %cst_79 = arith.constant dense<0.000000e+00> : vector<4x8x8xf32>
    %222 = tpu.matmul %220, %221, %cst_79 {dimension_numbers = #tpu.dot_dimension_numbers<[2], [2], [1], [1], [0, 0, 0, 1, 1, 1], [0], [0]>} : vector<4x8x8xbf16>, vector<4x8x8xbf16>, vector<4x8x8xf32> -> vector<4x8x8xf32>
    "tpu.trace_stop"() : () -> ()
    %223 = vector.broadcast %7 : vector<1x1x8xf32> to vector<4x8x8xf32>
    %224 = arith.addf %222, %223 : vector<4x8x8xf32>
    %cst_80 = arith.constant dense<0xFF800000> : vector<4x8xf32>
    %225 = vector.multi_reduction <maximumf>, %224, %cst_80 [2] : vector<4x8x8xf32> to vector<4x8xf32>
    %226 = vector.shape_cast %225 : vector<4x8xf32> to vector<4x8x1xf32>
    %227 = vector.broadcast %226 : vector<4x8x1xf32> to vector<4x8x8xf32>
    %228 = arith.subf %224, %227 : vector<4x8x8xf32>
    %229 = math.exp %228 : vector<4x8x8xf32>
    %cst_81 = arith.constant dense<0.000000e+00> : vector<4x8xf32>
    %230 = vector.multi_reduction <add>, %229, %cst_81 [2] : vector<4x8x8xf32> to vector<4x8xf32>
    %231 = vector.shape_cast %230 : vector<4x8xf32> to vector<4x8x1xf32>
    %232 = tpu.reciprocal %231 {approx = true} : vector<4x8x1xf32> -> vector<4x8x1xf32>
    %233 = vector.broadcast %232 : vector<4x8x1xf32> to vector<4x8x8xf32>
    %234 = arith.mulf %229, %233 : vector<4x8x8xf32>
    %235 = arith.truncf %234 : vector<4x8x8xf32> to vector<4x8x8xbf16>
    %236 = arith.truncf %219 : vector<4x8x8xf32> to vector<4x8x8xbf16>
    "tpu.trace_start"() <{level = 10 : i32, message = "hqk,hkd->hqd"}> : () -> ()
    %cst_82 = arith.constant dense<0.000000e+00> : vector<4x8x8xf32>
    %237 = tpu.matmul %235, %236, %cst_82 {dimension_numbers = #tpu.dot_dimension_numbers<[2], [1], [1], [2], [0, 0, 0, 1, 1, 2], [0], [0]>} : vector<4x8x8xbf16>, vector<4x8x8xbf16>, vector<4x8x8xf32> -> vector<4x8x8xf32>
    "tpu.trace_stop"() : () -> ()
    %238 = arith.truncf %237 : vector<4x8x8xf32> to vector<4x8x8xbf16>
    %c1_83 = arith.constant 1 : index
    %c0_84 = arith.constant 0 : index
    %c0_85 = arith.constant 0 : index
    %c0_86 = arith.constant 0 : index
    %239 = vector.load %arg7[%c1_83, %c0_84, %c0_85, %c0_86] : memref<2x4x8x128xbf16, #tpu.memory_space<vmem>>, vector<1x4x8x128xbf16>
    %240 = vector.shape_cast %239 : vector<1x4x8x128xbf16> to vector<4x8x128xbf16>
    "tpu.trace_start"() <{level = 10 : i32, message = "hqd,hde->hqe"}> : () -> ()
    %cst_87 = arith.constant dense<0.000000e+00> : vector<4x8x128xf32>
    %241 = tpu.matmul %238, %240, %cst_87 {dimension_numbers = #tpu.dot_dimension_numbers<[2], [1], [1], [2], [0, 0, 0, 1, 1, 2], [0], [0]>} : vector<4x8x8xbf16>, vector<4x8x128xbf16>, vector<4x8x128xf32> -> vector<4x8x128xf32>
    "tpu.trace_stop"() : () -> ()
    %cst_88 = arith.constant dense<0.000000e+00> : vector<8x128xf32>
    %242 = vector.multi_reduction <add>, %241, %cst_88 [0] : vector<4x8x128xf32> to vector<8x128xf32>
    %c1_89 = arith.constant 1 : index
    %c0_90 = arith.constant 0 : index
    %c0_91 = arith.constant 0 : index
    %243 = vector.load %arg8[%c1_89, %c0_90, %c0_91] : memref<2x1x128xf32, #tpu.memory_space<vmem>>, vector<1x1x128xf32>
    %244 = vector.shape_cast %243 : vector<1x1x128xf32> to vector<1x128xf32>
    %245 = vector.broadcast %244 : vector<1x128xf32> to vector<8x128xf32>
    %246 = arith.addf %242, %245 : vector<8x128xf32>
    %247 = arith.addf %184, %246 : vector<8x128xf32>
    %c1_92 = arith.constant 1 : index
    %c0_93 = arith.constant 0 : index
    %c0_94 = arith.constant 0 : index
    %248 = vector.load %arg9[%c1_92, %c0_93, %c0_94] : memref<2x1x128xf32, #tpu.memory_space<vmem>>, vector<1x1x128xf32>
    %249 = vector.shape_cast %248 : vector<1x1x128xf32> to vector<1x128xf32>
    %c1_95 = arith.constant 1 : index
    %c0_96 = arith.constant 0 : index
    %c0_97 = arith.constant 0 : index
    %250 = vector.load %arg10[%c1_95, %c0_96, %c0_97] : memref<2x1x128xf32, #tpu.memory_space<vmem>>, vector<1x1x128xf32>
    %251 = vector.shape_cast %250 : vector<1x1x128xf32> to vector<1x128xf32>
    %252 = vector.broadcast %4 : vector<1x128xf32> to vector<8x128xf32>
    %253 = arith.mulf %247, %252 : vector<8x128xf32>
    %cst_98 = arith.constant dense<0.000000e+00> : vector<8xf32>
    %254 = vector.multi_reduction <add>, %253, %cst_98 [1] : vector<8x128xf32> to vector<8xf32>
    %255 = vector.shape_cast %254 : vector<8xf32> to vector<8x1xf32>
    %cst_99 = arith.constant 3.125000e-02 : f32
    %256 = vector.broadcast %cst_99 : f32 to vector<8x1xf32>
    %257 = arith.mulf %255, %256 : vector<8x1xf32>
    %258 = vector.broadcast %257 : vector<8x1xf32> to vector<8x128xf32>
    %259 = arith.subf %247, %258 : vector<8x128xf32>
    %260 = vector.broadcast %4 : vector<1x128xf32> to vector<8x128xf32>
    %261 = arith.mulf %259, %260 : vector<8x128xf32>
    %262 = arith.mulf %261, %261 : vector<8x128xf32>
    %cst_100 = arith.constant dense<0.000000e+00> : vector<8xf32>
    %263 = vector.multi_reduction <add>, %262, %cst_100 [1] : vector<8x128xf32> to vector<8xf32>
    %264 = vector.shape_cast %263 : vector<8xf32> to vector<8x1xf32>
    %cst_101 = arith.constant 3.125000e-02 : f32
    %265 = vector.broadcast %cst_101 : f32 to vector<8x1xf32>
    %266 = arith.mulf %264, %265 : vector<8x1xf32>
    %cst_102 = arith.constant 9.99999974E-6 : f32
    %267 = vector.broadcast %cst_102 : f32 to vector<8x1xf32>
    %268 = arith.addf %266, %267 : vector<8x1xf32>
    %269 = math.rsqrt %268 : vector<8x1xf32>
    %270 = vector.broadcast %269 : vector<8x1xf32> to vector<8x128xf32>
    %271 = arith.mulf %261, %270 : vector<8x128xf32>
    %272 = vector.broadcast %249 : vector<1x128xf32> to vector<8x128xf32>
    %273 = arith.mulf %271, %272 : vector<8x128xf32>
    %274 = vector.broadcast %251 : vector<1x128xf32> to vector<8x128xf32>
    %275 = arith.addf %273, %274 : vector<8x128xf32>
    %276 = arith.truncf %275 : vector<8x128xf32> to vector<8x128xbf16>
    %c1_103 = arith.constant 1 : index
    %c0_104 = arith.constant 0 : index
    %c0_105 = arith.constant 0 : index
    %277 = vector.load %arg11[%c1_103, %c0_104, %c0_105] : memref<2x128x128xbf16, #tpu.memory_space<vmem>>, vector<1x128x128xbf16>
    %278 = vector.shape_cast %277 : vector<1x128x128xbf16> to vector<128x128xbf16>
    %cst_106 = arith.constant dense<0.000000e+00> : vector<8x128xf32>
    %279 = tpu.matmul %276, %278, %cst_106 {dimension_numbers = #tpu.dot_dimension_numbers<[1], [0], [0], [1], [0, 0, 1, 1], [], []>} : vector<8x128xbf16>, vector<128x128xbf16>, vector<8x128xf32> -> vector<8x128xf32>
    %c1_107 = arith.constant 1 : index
    %c0_108 = arith.constant 0 : index
    %c0_109 = arith.constant 0 : index
    %280 = vector.load %arg12[%c1_107, %c0_108, %c0_109] : memref<2x1x128xf32, #tpu.memory_space<vmem>>, vector<1x1x128xf32>
    %281 = vector.shape_cast %280 : vector<1x1x128xf32> to vector<1x128xf32>
    %282 = vector.broadcast %281 : vector<1x128xf32> to vector<8x128xf32>
    %283 = arith.addf %279, %282 : vector<8x128xf32>
    %cst_110 = arith.constant 5.000000e-01 : f32
    %284 = vector.broadcast %cst_110 : f32 to vector<8x128xf32>
    %285 = arith.mulf %284, %283 : vector<8x128xf32>
    %cst_111 = arith.constant 4.471500e-02 : f32
    %286 = vector.broadcast %cst_111 : f32 to vector<8x128xf32>
    %287 = arith.mulf %286, %283 : vector<8x128xf32>
    %288 = arith.mulf %287, %283 : vector<8x128xf32>
    %289 = arith.mulf %288, %283 : vector<8x128xf32>
    %290 = arith.addf %283, %289 : vector<8x128xf32>
    %cst_112 = arith.constant 0.797884583 : f32
    %291 = vector.broadcast %cst_112 : f32 to vector<8x128xf32>
    %292 = arith.mulf %291, %290 : vector<8x128xf32>
    %293 = math.tanh %292 : vector<8x128xf32>
    %cst_113 = arith.constant 1.000000e+00 : f32
    %294 = vector.broadcast %cst_113 : f32 to vector<8x128xf32>
    %295 = arith.addf %294, %293 : vector<8x128xf32>
    %296 = arith.mulf %285, %295 : vector<8x128xf32>
    %297 = arith.truncf %296 : vector<8x128xf32> to vector<8x128xbf16>
    %c1_114 = arith.constant 1 : index
    %c0_115 = arith.constant 0 : index
    %c0_116 = arith.constant 0 : index
    %298 = vector.load %arg13[%c1_114, %c0_115, %c0_116] : memref<2x128x128xbf16, #tpu.memory_space<vmem>>, vector<1x128x128xbf16>
    %299 = vector.shape_cast %298 : vector<1x128x128xbf16> to vector<128x128xbf16>
    %cst_117 = arith.constant dense<0.000000e+00> : vector<8x128xf32>
    %300 = tpu.matmul %297, %299, %cst_117 {dimension_numbers = #tpu.dot_dimension_numbers<[1], [0], [0], [1], [0, 0, 1, 1], [], []>} : vector<8x128xbf16>, vector<128x128xbf16>, vector<8x128xf32> -> vector<8x128xf32>
    %c1_118 = arith.constant 1 : index
    %c0_119 = arith.constant 0 : index
    %c0_120 = arith.constant 0 : index
    %301 = vector.load %arg14[%c1_118, %c0_119, %c0_120] : memref<2x1x128xf32, #tpu.memory_space<vmem>>, vector<1x1x128xf32>
    %302 = vector.shape_cast %301 : vector<1x1x128xf32> to vector<1x128xf32>
    %303 = vector.broadcast %302 : vector<1x128xf32> to vector<8x128xf32>
    %304 = arith.addf %300, %303 : vector<8x128xf32>
    %305 = arith.addf %275, %304 : vector<8x128xf32>
    %c1_121 = arith.constant 1 : index
    %c0_122 = arith.constant 0 : index
    %c0_123 = arith.constant 0 : index
    %306 = vector.load %arg15[%c1_121, %c0_122, %c0_123] : memref<2x1x128xf32, #tpu.memory_space<vmem>>, vector<1x1x128xf32>
    %307 = vector.shape_cast %306 : vector<1x1x128xf32> to vector<1x128xf32>
    %c1_124 = arith.constant 1 : index
    %c0_125 = arith.constant 0 : index
    %c0_126 = arith.constant 0 : index
    %308 = vector.load %arg16[%c1_124, %c0_125, %c0_126] : memref<2x1x128xf32, #tpu.memory_space<vmem>>, vector<1x1x128xf32>
    %309 = vector.shape_cast %308 : vector<1x1x128xf32> to vector<1x128xf32>
    %310 = vector.broadcast %4 : vector<1x128xf32> to vector<8x128xf32>
    %311 = arith.mulf %305, %310 : vector<8x128xf32>
    %cst_127 = arith.constant dense<0.000000e+00> : vector<8xf32>
    %312 = vector.multi_reduction <add>, %311, %cst_127 [1] : vector<8x128xf32> to vector<8xf32>
    %313 = vector.shape_cast %312 : vector<8xf32> to vector<8x1xf32>
    %cst_128 = arith.constant 3.125000e-02 : f32
    %314 = vector.broadcast %cst_128 : f32 to vector<8x1xf32>
    %315 = arith.mulf %313, %314 : vector<8x1xf32>
    %316 = vector.broadcast %315 : vector<8x1xf32> to vector<8x128xf32>
    %317 = arith.subf %305, %316 : vector<8x128xf32>
    %318 = vector.broadcast %4 : vector<1x128xf32> to vector<8x128xf32>
    %319 = arith.mulf %317, %318 : vector<8x128xf32>
    %320 = arith.mulf %319, %319 : vector<8x128xf32>
    %cst_129 = arith.constant dense<0.000000e+00> : vector<8xf32>
    %321 = vector.multi_reduction <add>, %320, %cst_129 [1] : vector<8x128xf32> to vector<8xf32>
    %322 = vector.shape_cast %321 : vector<8xf32> to vector<8x1xf32>
    %cst_130 = arith.constant 3.125000e-02 : f32
    %323 = vector.broadcast %cst_130 : f32 to vector<8x1xf32>
    %324 = arith.mulf %322, %323 : vector<8x1xf32>
    %cst_131 = arith.constant 9.99999974E-6 : f32
    %325 = vector.broadcast %cst_131 : f32 to vector<8x1xf32>
    %326 = arith.addf %324, %325 : vector<8x1xf32>
    %327 = math.rsqrt %326 : vector<8x1xf32>
    %328 = vector.broadcast %327 : vector<8x1xf32> to vector<8x128xf32>
    %329 = arith.mulf %319, %328 : vector<8x128xf32>
    %330 = vector.broadcast %307 : vector<1x128xf32> to vector<8x128xf32>
    %331 = arith.mulf %329, %330 : vector<8x128xf32>
    %332 = vector.broadcast %309 : vector<1x128xf32> to vector<8x128xf32>
    %333 = arith.addf %331, %332 : vector<8x128xf32>
    %c0_132 = arith.constant 0 : index
    %c0_133 = arith.constant 0 : index
    %c0_134 = arith.constant 0 : index
    %334 = vector.load %arg17[%c0_132, %c0_133, %c0_134] : memref<1x8x128xf32, #tpu.memory_space<vmem>>, vector<1x8x128xf32>
    %335 = vector.shape_cast %334 : vector<1x8x128xf32> to vector<8x128xf32>
    %336 = vector.shape_cast %333 : vector<8x128xf32> to vector<1x8x128xf32>
    tpu.vector_store %arg17[%c0_132, %c0_133, %c0_134], %336 {strides = array<i32>} : memref<1x8x128xf32, #tpu.memory_space<vmem>>, vector<1x8x128xf32>,
    return
  }
  func.func @transform_0(%arg0: i32) -> (i32, i32, i32) {
    %c0_i32 = arith.constant 0 : i32
    %c0_i32_0 = arith.constant 0 : i32
    %c0_i32_1 = arith.constant 0 : i32
    return %arg0, %c0_i32, %c0_i32_0 : i32, i32, i32
  }
  func.func @transform_1(%arg0: i32) -> (i32, i32, i32) {
    %c0_i32 = arith.constant 0 : i32
    %c0_i32_0 = arith.constant 0 : i32
    %c0_i32_1 = arith.constant 0 : i32
    return %arg0, %c0_i32, %c0_i32_0 : i32, i32, i32
  }
  func.func @transform_2(%arg0: i32) -> (i32, i32) {
    %c0_i32 = arith.constant 0 : i32
    %c0_i32_0 = arith.constant 0 : i32
    %c0_i32_1 = arith.constant 0 : i32
    return %c0_i32, %c0_i32_0 : i32, i32
  }
  func.func @transform_3(%arg0: i32) -> (i32, i32) {
    %c0_i32 = arith.constant 0 : i32
    %c0_i32_0 = arith.constant 0 : i32
    %c0_i32_1 = arith.constant 0 : i32
    return %c0_i32, %c0_i32_0 : i32, i32
  }
  func.func @transform_4(%arg0: i32) -> (i32, i32, i32) {
    %c0_i32 = arith.constant 0 : i32
    %c0_i32_0 = arith.constant 0 : i32
    %c0_i32_1 = arith.constant 0 : i32
    %c0_i32_2 = arith.constant 0 : i32
    return %c0_i32, %c0_i32_0, %c0_i32_1 : i32, i32, i32
  }
  func.func @transform_5(%arg0: i32) -> (i32, i32, i32) {
    %c0_i32 = arith.constant 0 : i32
    %c0_i32_0 = arith.constant 0 : i32
    %c0_i32_1 = arith.constant 0 : i32
    %c0_i32_2 = arith.constant 0 : i32
    return %c0_i32, %c0_i32_0, %c0_i32_1 : i32, i32, i32
  }
  func.func @transform_6(%arg0: i32) -> (i32, i32, i32, i32) {
    %c0_i32 = arith.constant 0 : i32
    %c0_i32_0 = arith.constant 0 : i32
    %c0_i32_1 = arith.constant 0 : i32
    %c0_i32_2 = arith.constant 0 : i32
    %c0_i32_3 = arith.constant 0 : i32
    return %c0_i32, %c0_i32_0, %c0_i32_1, %c0_i32_2 : i32, i32, i32, i32
  }
  func.func @transform_7(%arg0: i32) -> (i32, i32, i32) {
    %c0_i32 = arith.constant 0 : i32
    %c0_i32_0 = arith.constant 0 : i32
    %c0_i32_1 = arith.constant 0 : i32
    %c0_i32_2 = arith.constant 0 : i32
    return %c0_i32, %c0_i32_0, %c0_i32_1 : i32, i32, i32
  }
  func.func @transform_8(%arg0: i32) -> (i32, i32, i32) {
    %c0_i32 = arith.constant 0 : i32
    %c0_i32_0 = arith.constant 0 : i32
    %c0_i32_1 = arith.constant 0 : i32
    %c0_i32_2 = arith.constant 0 : i32
    return %c0_i32, %c0_i32_0, %c0_i32_1 : i32, i32, i32
  }
  func.func @transform_9(%arg0: i32) -> (i32, i32, i32) {
    %c0_i32 = arith.constant 0 : i32
    %c0_i32_0 = arith.constant 0 : i32
    %c0_i32_1 = arith.constant 0 : i32
    %c0_i32_2 = arith.constant 0 : i32
    return %c0_i32, %c0_i32_0, %c0_i32_1 : i32, i32, i32
  }
  func.func @transform_10(%arg0: i32) -> (i32, i32, i32) {
    %c0_i32 = arith.constant 0 : i32
    %c0_i32_0 = arith.constant 0 : i32
    %c0_i32_1 = arith.constant 0 : i32
    %c0_i32_2 = arith.constant 0 : i32
    return %c0_i32, %c0_i32_0, %c0_i32_1 : i32, i32, i32
  }
  func.func @transform_11(%arg0: i32) -> (i32, i32, i32) {
    %c0_i32 = arith.constant 0 : i32
    %c0_i32_0 = arith.constant 0 : i32
    %c0_i32_1 = arith.constant 0 : i32
    %c0_i32_2 = arith.constant 0 : i32
    return %c0_i32, %c0_i32_0, %c0_i32_1 : i32, i32, i32
  }
  func.func @transform_12(%arg0: i32) -> (i32, i32, i32) {
    %c0_i32 = arith.constant 0 : i32
    %c0_i32_0 = arith.constant 0 : i32
    %c0_i32_1 = arith.constant 0 : i32
    %c0_i32_2 = arith.constant 0 : i32
    return %c0_i32, %c0_i32_0, %c0_i32_1 : i32, i32, i32
  }
  func.func @transform_13(%arg0: i32) -> (i32, i32, i32) {
    %c0_i32 = arith.constant 0 : i32
    %c0_i32_0 = arith.constant 0 : i32
    %c0_i32_1 = arith.constant 0 : i32
    %c0_i32_2 = arith.constant 0 : i32
    return %c0_i32, %c0_i32_0, %c0_i32_1 : i32, i32, i32
  }
  func.func @transform_14(%arg0: i32) -> (i32, i32, i32) {
    %c0_i32 = arith.constant 0 : i32
    %c0_i32_0 = arith.constant 0 : i32
    %c0_i32_1 = arith.constant 0 : i32
    %c0_i32_2 = arith.constant 0 : i32
    return %c0_i32, %c0_i32_0, %c0_i32_1 : i32, i32, i32
  }
  func.func @transform_15(%arg0: i32) -> (i32, i32, i32) {
    %c0_i32 = arith.constant 0 : i32
    %c0_i32_0 = arith.constant 0 : i32
    %c0_i32_1 = arith.constant 0 : i32
    %c0_i32_2 = arith.constant 0 : i32
    return %c0_i32, %c0_i32_0, %c0_i32_1 : i32, i32, i32
  }
  func.func @transform_16(%arg0: i32) -> (i32, i32, i32) {
    %c0_i32 = arith.constant 0 : i32
    %c0_i32_0 = arith.constant 0 : i32
    %c0_i32_1 = arith.constant 0 : i32
    return %arg0, %c0_i32, %c0_i32_0 : i32, i32, i32
  }
}

</mosaic_0001>

<llo_original>
// kernel: tpu_custom_call.1
$region0: #{tpu_custom_call.1}
  #allocation0 [shape = 'u32[]', space=smem, size = 0x4, offset = 0x4, fixed_abs, tag = 'smem constant byte address 0x4 - core index']
  #allocation1 [shape = 'u32[72,128]{1,0:T(1,128)}', space=vmem, size = 0x9000, scoped, tag = 'internal scratch']
  %s0 = inlined_call_operand.hbm [shape: f32[2,8,128], index: 0, kind: input, shape index: {}]
  %s1 = inlined_call_operand.hbm [shape: f32[2,1,8], index: 1, kind: input, shape index: {}]
  %s2 = inlined_call_operand.hbm [shape: f32[1,128], index: 2, kind: input, shape index: {}]
  %s3 = inlined_call_operand.hbm [shape: f32[1,128], index: 3, kind: input, shape index: {}]
  %s4 = inlined_call_operand.hbm [shape: bf16[2,128,128], index: 4, kind: input, shape index: {}]
  %s5 = inlined_call_operand.vmem [shape: f32[2,1,128], index: 5, kind: input, shape index: {}]
  %s6 = inlined_call_operand.hbm [shape: bf16[2,4,8,128], index: 6, kind: input, shape index: {}]
  %s7 = inlined_call_operand.vmem [shape: f32[2,1,128], index: 7, kind: input, shape index: {}]
  %s8 = inlined_call_operand.vmem [shape: f32[2,1,128], index: 8, kind: input, shape index: {}]
  %s9 = inlined_call_operand.vmem [shape: f32[2,1,128], index: 9, kind: input, shape index: {}]
  %s10 = inlined_call_operand.hbm [shape: bf16[2,128,128], index: 10, kind: input, shape index: {}]
  %s11 = inlined_call_operand.vmem [shape: f32[2,1,128], index: 11, kind: input, shape index: {}]
  %s12 = inlined_call_operand.hbm [shape: bf16[2,128,128], index: 12, kind: input, shape index: {}]
  %s13 = inlined_call_operand.vmem [shape: f32[2,1,128], index: 13, kind: input, shape index: {}]
  %s14 = inlined_call_operand.hbm [shape: f32[2,1,128], index: 14, kind: input, shape index: {}]
  %s15 = inlined_call_operand.vmem [shape: f32[2,1,128], index: 15, kind: input, shape index: {}]
  %s16 = inlined_call_operand.hbm [shape: f32[2,8,128], index: 16, kind: output, shape index: {}]
  %s17 = sld [smem:[#allocation0]]
  $region133: #{tpu_custom_call.1} parent=0
    _
  %s19 = ssub.s32 1, %s17
  %s20 = scalar_select 0, %s19, %s17
  $region1: #{tpu_custom_call.1} parent=0
    #allocation2 [shape = 'u8[8192]{0}', space=vmem, size = 0x2000, scoped, tag = 'input window, operand 0']
    #allocation3 [shape = 's32[2]{0}', space=sflag, size = 0x8, scoped, tag = 'scoped memory for tpu_custom_call.1']
    #allocation4 [shape = 's32[2]{0}', space=sflag, size = 0x8, scoped, tag = 'scoped memory for tpu_custom_call.1']
    #allocation5 [shape = 'u8[1024]{0}', space=vmem, size = 0x400, scoped, tag = 'input window, operand 1']
    #allocation6 [shape = 's32[2]{0}', space=sflag, size = 0x8, scoped, tag = 'scoped memory for tpu_custom_call.1']
    #allocation7 [shape = 'u8[512]{0}', space=vmem, size = 0x400, scoped, tag = 'input window, operand 2, single buffered']
    #allocation8 [shape = 'u8[512]{0}', space=vmem, size = 0x400, scoped, tag = 'input window, operand 3, single buffered']
    #allocation9 [shape = 's32[1]{0}', space=sflag, size = 0x4, scoped, tag = 'scoped memory for tpu_custom_call.1']
    #allocation10 [shape = 'u8[65536]{0}', space=vmem, size = 0x10000, scoped, tag = 'input window, operand 4, single buffered']
    #allocation11 [shape = 'u8[16384]{0}', space=vmem, size = 0x4000, scoped, tag = 'input window, operand 6, single buffered']
    #allocation12 [shape = 's32[1]{0}', space=sflag, size = 0x4, scoped, tag = 'scoped memory for tpu_custom_call.1']
    #allocation13 [shape = 'u8[65536]{0}', space=vmem, size = 0x10000, scoped, tag = 'input window, operand 10, single buffered']
    #allocation14 [shape = 'u8[65536]{0}', space=vmem, size = 0x10000, scoped, tag = 'input window, operand 12, single buffered']
    #allocation15 [shape = 's32[1]{0}', space=sflag, size = 0x4, scoped, tag = 'scoped memory for tpu_custom_call.1']
    #allocation16 [shape = 'u8[1024]{0}', space=vmem, size = 0x400, scoped, tag = 'input window, operand 14, single buffered']
    #allocation17 [shape = 'u8[8192]{0}', space=vmem, size = 0x2000, scoped, tag = 'output window, operand 0']
    %21 = vsyncpa [#allocation3], 0
    %s22 = scalar_lea.sflag [#allocation3], 1
    %23 = vsyncpa %s22, 0
    %24 = vsyncpa [#allocation6], 0
    %s25 = scalar_lea.sflag [#allocation6], 1
    %26 = vsyncpa %s25, 0
    %27 = vsyncpa [#allocation9], 0
    %28 = vsyncpa [#allocation12], 0
    %29 = vsyncpa [#allocation15], 0
    %30 = vsyncpa [#allocation4], 0
    %s31 = scalar_lea.sflag [#allocation4], 1
    %32 = vsyncpa %s31, 0
    loop: start=0, step=1, limit=4
    $region2: #{tpu_custom_call.1} parent=1 // loop_pre_header
      _
    $region3: #{tpu_custom_call.1} parent=1 // loop_header
      %s34 = sphi 0, %s38
      %p35 = scmp.ge.s32.totalorder %s34, 4
      %s44 = sphi 0, %s46
      %s47 = sphi 0, %s44
      %s48 = sphi 0, %s47
      %s64 = sphi 0, %s48
      %s70 = sphi 0, %s72
      %s73 = sphi 0, %s70
      %s74 = sphi 0, %s73
      %s90 = sphi 0, %s74
      %s94 = sphi 0, %s94
      %s96 = sphi 0, %s94
      %s97 = sphi 0, %s96
      %s111 = sphi 0, %s97
      %s115 = sphi 0, %s115
      %s117 = sphi 0, %s115
      %s118 = sphi 0, %s117
      %s132 = sphi 0, %s118
      %s136 = sphi 0, %s136
      %s138 = sphi 0, %s136
      %s139 = sphi 0, %s138
      %s153 = sphi 0, %s139
      %s157 = sphi 0, %s157
      %s159 = sphi 0, %s157
      %s160 = sphi 0, %s159
      %s174 = sphi 0, %s160
      %s178 = sphi 0, %s178
      %s180 = sphi 0, %s178
      %s181 = sphi 0, %s180
      %s195 = sphi 0, %s181
      %s199 = sphi 0, %s199
      %s201 = sphi 0, %s199
      %s202 = sphi 0, %s201
      %s216 = sphi 0, %s202
      %s220 = sphi 0, %s220
      %s222 = sphi 0, %s220
      %s223 = sphi 0, %s222
      %s237 = sphi 0, %s223
      %s241 = sphi 0, %s241
      %s243 = sphi 0, %s241
      %s244 = sphi 0, %s243
      %s258 = sphi 0, %s244
      %s262 = sphi 0, %s262
      %s264 = sphi 0, %s262
      %s265 = sphi 0, %s264
      %s279 = sphi 0, %s265
      %s283 = sphi 0, %s283
      %s285 = sphi 0, %s283
      %s286 = sphi 0, %s285
      %s300 = sphi 0, %s286
      %s304 = sphi 0, %s304
      %s306 = sphi 0, %s304
      %s307 = sphi 0, %s306
      %s321 = sphi 0, %s307
      %s325 = sphi 0, %s325
      %s327 = sphi 0, %s325
      %s328 = sphi 0, %s327
      %s342 = sphi 0, %s328
      %s346 = sphi 0, %s346
      %s348 = sphi 0, %s346
      %s349 = sphi 0, %s348
      %s363 = sphi 0, %s349
      %s367 = sphi 0, %s367
      %s369 = sphi 0, %s367
      %s370 = sphi 0, %s369
      %s384 = sphi 0, %s370
      %s390 = sphi 0, %s392
      %s393 = sphi 0, %s390
      %s394 = sphi 0, %s393
      %s410 = sphi 0, %s394
    $region4: #{tpu_custom_call.1} parent=1 // loop_header_branch
      %37 = sbr.rel (%p35) target = $region8
    $region5: #{tpu_custom_call.1} parent=1 // loop_body
      %s39 = ssub.s32 %s34, 1
      %s40 = ssub.s32 %s34, 2
      %s41 = sadd.s32 %s34, 1
      %s42 = ssub.s32 %s34, %s41
      %p43 = scmp.eq.s32.totalorder %s42, 0
      %s45 = sadd.s32 %s44, 1
      %s46 = scalar_select %p43, %s44, %s45
      %p49 = pneg %p43
      %p50 = scmp.eq.s32.totalorder %s34, 1
      %p51 = por %p49, %p50
      %p52 = scmp.ne.s32.totalorder %s44, %s47
      %p53 = scmp.eq.s32.totalorder %s34, 0
      %p54 = por %p52, %p53
      %p55 = scmp.ne.s32.totalorder %s44, %s47
      %p56 = scmp.eq.s32.totalorder %s39, 1
      %p57 = por %p55, %p56
      %p58 = scmp.ne.s32.totalorder %s47, %s48
      %p59 = scmp.eq.s32.totalorder %s39, 0
      %p60 = por %p58, %p59
      %p61 = scmp.ne.s32.totalorder %s47, %s48
      %p62 = scmp.eq.s32.totalorder %s40, 1
      %p63 = por %p61, %p62
      %p65 = scmp.ne.s32.totalorder %s48, %s64
      %p66 = scmp.eq.s32.totalorder %s40, 0
      %p67 = por %p65, %p66
      %s68 = ssub.s32 %s34, %s41
      %p69 = scmp.eq.s32.totalorder %s68, 0
      %s71 = sadd.s32 %s70, 1
      %s72 = scalar_select %p69, %s70, %s71
      %p75 = pneg %p69
      %p76 = scmp.eq.s32.totalorder %s34, 1
      %p77 = por %p75, %p76
      %p78 = scmp.ne.s32.totalorder %s70, %s73
      %p79 = scmp.eq.s32.totalorder %s34, 0
      %p80 = por %p78, %p79
      %p81 = scmp.ne.s32.totalorder %s70, %s73
      %p82 = scmp.eq.s32.totalorder %s39, 1
      %p83 = por %p81, %p82
      %p84 = scmp.ne.s32.totalorder %s73, %s74
      %p85 = scmp.eq.s32.totalorder %s39, 0
      %p86 = por %p84, %p85
      %p87 = scmp.ne.s32.totalorder %s73, %s74
      %p88 = scmp.eq.s32.totalorder %s40, 1
      %p89 = por %p87, %p88
      %p91 = scmp.ne.s32.totalorder %s74, %s90
      %p92 = scmp.eq.s32.totalorder %s40, 0
      %p93 = por %p91, %p92
      %s95 = sadd.s32 %s94, 1
      %p98 = scmp.eq.s32.totalorder %s34, 1
      %p99 = scmp.ne.s32.totalorder %s94, %s96
      %p100 = scmp.eq.s32.totalorder %s34, 0
      %p101 = por %p99, %p100
      %p102 = scmp.ne.s32.totalorder %s94, %s96
      %p103 = scmp.eq.s32.totalorder %s39, 1
      %p104 = por %p102, %p103
      %p105 = scmp.ne.s32.totalorder %s96, %s97
      %p106 = scmp.eq.s32.totalorder %s39, 0
      %p107 = por %p105, %p106
      %p108 = scmp.ne.s32.totalorder %s96, %s97
      %p109 = scmp.eq.s32.totalorder %s40, 1
      %p110 = por %p108, %p109
      %p112 = scmp.ne.s32.totalorder %s97, %s111
      %p113 = scmp.eq.s32.totalorder %s40, 0
      %p114 = por %p112, %p113
      %s116 = sadd.s32 %s115, 1
      %p119 = scmp.eq.s32.totalorder %s34, 1
      %p120 = scmp.ne.s32.totalorder %s115, %s117
      %p121 = scmp.eq.s32.totalorder %s34, 0
      %p122 = por %p120, %p121
      %p123 = scmp.ne.s32.totalorder %s115, %s117
      %p124 = scmp.eq.s32.totalorder %s39, 1
      %p125 = por %p123, %p124
      %p126 = scmp.ne.s32.totalorder %s117, %s118
      %p127 = scmp.eq.s32.totalorder %s39, 0
      %p128 = por %p126, %p127
      %p129 = scmp.ne.s32.totalorder %s117, %s118
      %p130 = scmp.eq.s32.totalorder %s40, 1
      %p131 = por %p129, %p130
      %p133 = scmp.ne.s32.totalorder %s118, %s132
      %p134 = scmp.eq.s32.totalorder %s40, 0
      %p135 = por %p133, %p134
      %s137 = sadd.s32 %s136, 1
      %p140 = scmp.eq.s32.totalorder %s34, 1
      %p141 = scmp.ne.s32.totalorder %s136, %s138
      %p142 = scmp.eq.s32.totalorder %s34, 0
      %p143 = por %p141, %p142
      %p144 = scmp.ne.s32.totalorder %s136, %s138
      %p145 = scmp.eq.s32.totalorder %s39, 1
      %p146 = por %p144, %p145
      %p147 = scmp.ne.s32.totalorder %s138, %s139
      %p148 = scmp.eq.s32.totalorder %s39, 0
      %p149 = por %p147, %p148
      %p150 = scmp.ne.s32.totalorder %s138, %s139
      %p151 = scmp.eq.s32.totalorder %s40, 1
      %p152 = por %p150, %p151
      %p154 = scmp.ne.s32.totalorder %s139, %s153
      %p155 = scmp.eq.s32.totalorder %s40, 0
      %p156 = por %p154, %p155
      %s158 = sadd.s32 %s157, 1
      %p161 = scmp.eq.s32.totalorder %s34, 1
      %p162 = scmp.ne.s32.totalorder %s157, %s159
      %p163 = scmp.eq.s32.totalorder %s34, 0
      %p164 = por %p162, %p163
      %p165 = scmp.ne.s32.totalorder %s157, %s159
      %p166 = scmp.eq.s32.totalorder %s39, 1
      %p167 = por %p165, %p166
      %p168 = scmp.ne.s32.totalorder %s159, %s160
      %p169 = scmp.eq.s32.totalorder %s39, 0
      %p170 = por %p168, %p169
      %p171 = scmp.ne.s32.totalorder %s159, %s160
      %p172 = scmp.eq.s32.totalorder %s40, 1
      %p173 = por %p171, %p172
      %p175 = scmp.ne.s32.totalorder %s160, %s174
      %p176 = scmp.eq.s32.totalorder %s40, 0
      %p177 = por %p175, %p176
      %s179 = sadd.s32 %s178, 1
      %p182 = scmp.eq.s32.totalorder %s34, 1
      %p183 = scmp.ne.s32.totalorder %s178, %s180
      %p184 = scmp.eq.s32.totalorder %s34, 0
      %p185 = por %p183, %p184
      %p186 = scmp.ne.s32.totalorder %s178, %s180
      %p187 = scmp.eq.s32.totalorder %s39, 1
      %p188 = por %p186, %p187
      %p189 = scmp.ne.s32.totalorder %s180, %s181
      %p190 = scmp.eq.s32.totalorder %s39, 0
      %p191 = por %p189, %p190
      %p192 = scmp.ne.s32.totalorder %s180, %s181
      %p193 = scmp.eq.s32.totalorder %s40, 1
      %p194 = por %p192, %p193
      %p196 = scmp.ne.s32.totalorder %s181, %s195
      %p197 = scmp.eq.s32.totalorder %s40, 0
      %p198 = por %p196, %p197
      %s200 = sadd.s32 %s199, 1
      %p203 = scmp.eq.s32.totalorder %s34, 1
      %p204 = scmp.ne.s32.totalorder %s199, %s201
      %p205 = scmp.eq.s32.totalorder %s34, 0
      %p206 = por %p204, %p205
      %p207 = scmp.ne.s32.totalorder %s199, %s201
      %p208 = scmp.eq.s32.totalorder %s39, 1
      %p209 = por %p207, %p208
      %p210 = scmp.ne.s32.totalorder %s201, %s202
      %p211 = scmp.eq.s32.totalorder %s39, 0
      %p212 = por %p210, %p211
      %p213 = scmp.ne.s32.totalorder %s201, %s202
      %p214 = scmp.eq.s32.totalorder %s40, 1
      %p215 = por %p213, %p214
      %p217 = scmp.ne.s32.totalorder %s202, %s216
      %p218 = scmp.eq.s32.totalorder %s40, 0
      %p219 = por %p217, %p218
      %s221 = sadd.s32 %s220, 1
      %p224 = scmp.eq.s32.totalorder %s34, 1
      %p225 = scmp.ne.s32.totalorder %s220, %s222
      %p226 = scmp.eq.s32.totalorder %s34, 0
      %p227 = por %p225, %p226
      %p228 = scmp.ne.s32.totalorder %s220, %s222
      %p229 = scmp.eq.s32.totalorder %s39, 1
      %p230 = por %p228, %p229
      %p231 = scmp.ne.s32.totalorder %s222, %s223
      %p232 = scmp.eq.s32.totalorder %s39, 0
      %p233 = por %p231, %p232
      %p234 = scmp.ne.s32.totalorder %s222, %s223
      %p235 = scmp.eq.s32.totalorder %s40, 1
      %p236 = por %p234, %p235
      %p238 = scmp.ne.s32.totalorder %s223, %s237
      %p239 = scmp.eq.s32.totalorder %s40, 0
      %p240 = por %p238, %p239
      %s242 = sadd.s32 %s241, 1
      %p245 = scmp.eq.s32.totalorder %s34, 1
      %p246 = scmp.ne.s32.totalorder %s241, %s243
      %p247 = scmp.eq.s32.totalorder %s34, 0
      %p248 = por %p246, %p247
      %p249 = scmp.ne.s32.totalorder %s241, %s243
      %p250 = scmp.eq.s32.totalorder %s39, 1
      %p251 = por %p249, %p250
      %p252 = scmp.ne.s32.totalorder %s243, %s244
      %p253 = scmp.eq.s32.totalorder %s39, 0
      %p254 = por %p252, %p253
      %p255 = scmp.ne.s32.totalorder %s243, %s244
      %p256 = scmp.eq.s32.totalorder %s40, 1
      %p257 = por %p255, %p256
      %p259 = scmp.ne.s32.totalorder %s244, %s258
      %p260 = scmp.eq.s32.totalorder %s40, 0
      %p261 = por %p259, %p260
      %s263 = sadd.s32 %s262, 1
      %p266 = scmp.eq.s32.totalorder %s34, 1
      %p267 = scmp.ne.s32.totalorder %s262, %s264
      %p268 = scmp.eq.s32.totalorder %s34, 0
      %p269 = por %p267, %p268
      %p270 = scmp.ne.s32.totalorder %s262, %s264
      %p271 = scmp.eq.s32.totalorder %s39, 1
      %p272 = por %p270, %p271
      %p273 = scmp.ne.s32.totalorder %s264, %s265
      %p274 = scmp.eq.s32.totalorder %s39, 0
      %p275 = por %p273, %p274
      %p276 = scmp.ne.s32.totalorder %s264, %s265
      %p277 = scmp.eq.s32.totalorder %s40, 1
      %p278 = por %p276, %p277
      %p280 = scmp.ne.s32.totalorder %s265, %s279
      %p281 = scmp.eq.s32.totalorder %s40, 0
      %p282 = por %p280, %p281
      %s284 = sadd.s32 %s283, 1
      %p287 = scmp.eq.s32.totalorder %s34, 1
      %p288 = scmp.ne.s32.totalorder %s283, %s285
      %p289 = scmp.eq.s32.totalorder %s34, 0
      %p290 = por %p288, %p289
      %p291 = scmp.ne.s32.totalorder %s283, %s285
      %p292 = scmp.eq.s32.totalorder %s39, 1
      %p293 = por %p291, %p292
      %p294 = scmp.ne.s32.totalorder %s285, %s286
      %p295 = scmp.eq.s32.totalorder %s39, 0
      %p296 = por %p294, %p295
      %p297 = scmp.ne.s32.totalorder %s285, %s286
      %p298 = scmp.eq.s32.totalorder %s40, 1
      %p299 = por %p297, %p298
      %p301 = scmp.ne.s32.totalorder %s286, %s300
      %p302 = scmp.eq.s32.totalorder %s40, 0
      %p303 = por %p301, %p302
      %s305 = sadd.s32 %s304, 1
      %p308 = scmp.eq.s32.totalorder %s34, 1
      %p309 = scmp.ne.s32.totalorder %s304, %s306
      %p310 = scmp.eq.s32.totalorder %s34, 0
      %p311 = por %p309, %p310
      %p312 = scmp.ne.s32.totalorder %s304, %s306
      %p313 = scmp.eq.s32.totalorder %s39, 1
      %p314 = por %p312, %p313
      %p315 = scmp.ne.s32.totalorder %s306, %s307
      %p316 = scmp.eq.s32.totalorder %s39, 0
      %p317 = por %p315, %p316
      %p318 = scmp.ne.s32.totalorder %s306, %s307
      %p319 = scmp.eq.s32.totalorder %s40, 1
      %p320 = por %p318, %p319
      %p322 = scmp.ne.s32.totalorder %s307, %s321
      %p323 = scmp.eq.s32.totalorder %s40, 0
      %p324 = por %p322, %p323
      %s326 = sadd.s32 %s325, 1
      %p329 = scmp.eq.s32.totalorder %s34, 1
      %p330 = scmp.ne.s32.totalorder %s325, %s327
      %p331 = scmp.eq.s32.totalorder %s34, 0
      %p332 = por %p330, %p331
      %p333 = scmp.ne.s32.totalorder %s325, %s327
      %p334 = scmp.eq.s32.totalorder %s39, 1
      %p335 = por %p333, %p334
      %p336 = scmp.ne.s32.totalorder %s327, %s328
      %p337 = scmp.eq.s32.totalorder %s39, 0
      %p338 = por %p336, %p337
      %p339 = scmp.ne.s32.totalorder %s327, %s328
      %p340 = scmp.eq.s32.totalorder %s40, 1
      %p341 = por %p339, %p340
      %p343 = scmp.ne.s32.totalorder %s328, %s342
      %p344 = scmp.eq.s32.totalorder %s40, 0
      %p345 = por %p343, %p344
      %s347 = sadd.s32 %s346, 1
      %p350 = scmp.eq.s32.totalorder %s34, 1
      %p351 = scmp.ne.s32.totalorder %s346, %s348
      %p352 = scmp.eq.s32.totalorder %s34, 0
      %p353 = por %p351, %p352
      %p354 = scmp.ne.s32.totalorder %s346, %s348
      %p355 = scmp.eq.s32.totalorder %s39, 1
      %p356 = por %p354, %p355
      %p357 = scmp.ne.s32.totalorder %s348, %s349
      %p358 = scmp.eq.s32.totalorder %s39, 0
      %p359 = por %p357, %p358
      %p360 = scmp.ne.s32.totalorder %s348, %s349
      %p361 = scmp.eq.s32.totalorder %s40, 1
      %p362 = por %p360, %p361
      %p364 = scmp.ne.s32.totalorder %s349, %s363
      %p365 = scmp.eq.s32.totalorder %s40, 0
      %p366 = por %p364, %p365
      %s368 = sadd.s32 %s367, 1
      %p371 = scmp.eq.s32.totalorder %s34, 1
      %p372 = scmp.ne.s32.totalorder %s367, %s369
      %p373 = scmp.eq.s32.totalorder %s34, 0
      %p374 = por %p372, %p373
      %p375 = scmp.ne.s32.totalorder %s367, %s369
      %p376 = scmp.eq.s32.totalorder %s39, 1
      %p377 = por %p375, %p376
      %p378 = scmp.ne.s32.totalorder %s369, %s370
      %p379 = scmp.eq.s32.totalorder %s39, 0
      %p380 = por %p378, %p379
      %p381 = scmp.ne.s32.totalorder %s369, %s370
      %p382 = scmp.eq.s32.totalorder %s40, 1
      %p383 = por %p381, %p382
      %p385 = scmp.ne.s32.totalorder %s370, %s384
      %p386 = scmp.eq.s32.totalorder %s40, 0
      %p387 = por %p385, %p386
      %s388 = ssub.s32 %s34, %s41
      %p389 = scmp.eq.s32.totalorder %s388, 0
      %s391 = sadd.s32 %s390, 1
      %s392 = scalar_select %p389, %s390, %s391
      %p395 = pneg %p389
      %p396 = scmp.eq.s32.totalorder %s34, 1
      %p397 = por %p395, %p396
      %p398 = scmp.ne.s32.totalorder %s390, %s393
      %p399 = scmp.eq.s32.totalorder %s34, 0
      %p400 = por %p398, %p399
      %p401 = scmp.ne.s32.totalorder %s390, %s393
      %p402 = scmp.eq.s32.totalorder %s39, 1
      %p403 = por %p401, %p402
      %p404 = scmp.ne.s32.totalorder %s393, %s394
      %p405 = scmp.eq.s32.totalorder %s39, 0
      %p406 = por %p404, %p405
      %p407 = scmp.ne.s32.totalorder %s393, %s394
      %p408 = scmp.eq.s32.totalorder %s40, 1
      %p409 = por %p407, %p408
      %p411 = scmp.ne.s32.totalorder %s394, %s410
      %p412 = scmp.eq.s32.totalorder %s40, 0
      %p413 = por %p411, %p412
      %p414 = scmp.le.s32.totalorder 1, %s34
      %p415 = scmp.lt.s32.totalorder %s34, 3
      %p416 = pnand %p414, %p415
      %p417 = pneg %p416
      // Predicated region
      $region9: #{tpu_custom_call.1} parent=5 // pred_check
        _
      $region10: #{tpu_custom_call.1} parent=5 // pred_check_branch
        %419 = sbr.rel (%p416) target = $region12
      $region11: #{tpu_custom_call.1} parent=5 // pred_region
        %s420 = ssub.s32 %s34, 1
        // Predicated region
        $region13: #{tpu_custom_call.1} parent=11 // pred_check
          %p421 = pneg %p107
        $region14: #{tpu_custom_call.1} parent=11 // pred_check_branch
          %423 = sbr.rel (%p421) target = $region16
        $region15: #{tpu_custom_call.1} parent=11 // pred_region
          %425 = vsyncadd [#allocation6], 0
          %s427 = sshll.u32 %s2, 4
          %s428 = int_to_ptr.hbm [resolvable:$true] %s427
          %s429 = sshll.u32 [#allocation7], 4
          %s430 = int_to_ptr.vmem [resolvable:$true] %s429
          %432 = dma.hbm_to_vmem [thread:$0]  %s428, 16, %s430, [#allocation6]
        $region16: #{tpu_custom_call.1} parent=11 // pred_fallthru
          _
        // Predicated region
        $region17: #{tpu_custom_call.1} parent=11 // pred_check
          %p433 = pneg %p128
        $region18: #{tpu_custom_call.1} parent=11 // pred_check_branch
          %435 = sbr.rel (%p433) target = $region20
        $region19: #{tpu_custom_call.1} parent=11 // pred_region
          %437 = vsyncadd [#allocation9], 0
          %s439 = sshll.u32 %s3, 4
          %s440 = int_to_ptr.hbm [resolvable:$true] %s439
          %s441 = sshll.u32 [#allocation8], 4
          %s442 = int_to_ptr.vmem [resolvable:$true] %s441
          %444 = dma.hbm_to_vmem [thread:$0]  %s440, 16, %s442, [#allocation9]
        $region20: #{tpu_custom_call.1} parent=11 // pred_fallthru
          _
        // Predicated region
        $region21: #{tpu_custom_call.1} parent=11 // pred_check
          %p445 = pneg %p149
        $region22: #{tpu_custom_call.1} parent=11 // pred_check_branch
          %447 = sbr.rel (%p445) target = $region24
        $region23: #{tpu_custom_call.1} parent=11 // pred_region
          %449 = vsyncadd [#allocation9], 0
          %s450 = sshll.u32 %s4, 4
          %s451 = int_to_ptr.hbm [resolvable:$true] %s450
          %s452 = sshll.u32 [#allocation10], 4
          %s453 = int_to_ptr.vmem [resolvable:$true] %s452
          %458 = dma.hbm_to_vmem [thread:$0]  %s451, 2048, %s453, [#allocation9], 64, 64, 4
        $region24: #{tpu_custom_call.1} parent=11 // pred_fallthru
          _
        // Predicated region
        $region25: #{tpu_custom_call.1} parent=11 // pred_check
          %p459 = pneg %p170
        $region26: #{tpu_custom_call.1} parent=11 // pred_check_branch
          %461 = sbr.rel (%p459) target = $region28
        $region27: #{tpu_custom_call.1} parent=11 // pred_region
          _
        $region28: #{tpu_custom_call.1} parent=11 // pred_fallthru
          _
        // Predicated region
        $region29: #{tpu_custom_call.1} parent=11 // pred_check
          %p462 = pneg %p191
        $region30: #{tpu_custom_call.1} parent=11 // pred_check_branch
          %464 = sbr.rel (%p462) target = $region32
        $region31: #{tpu_custom_call.1} parent=11 // pred_region
          %466 = vsyncadd [#allocation12], 0
          %s467 = sshll.u32 %s6, 4
          %s468 = int_to_ptr.hbm [resolvable:$true] %s467
          %s469 = sshll.u32 [#allocation11], 4
          %s470 = int_to_ptr.vmem [resolvable:$true] %s469
          %475 = dma.hbm_to_vmem [thread:$0]  %s468, 512, %s470, [#allocation12], 64, 64, 4
        $region32: #{tpu_custom_call.1} parent=11 // pred_fallthru
          _
        // Predicated region
        $region33: #{tpu_custom_call.1} parent=11 // pred_check
          %p476 = pneg %p212
        $region34: #{tpu_custom_call.1} parent=11 // pred_check_branch
          %478 = sbr.rel (%p476) target = $region36
        $region35: #{tpu_custom_call.1} parent=11 // pred_region
          _
        $region36: #{tpu_custom_call.1} parent=11 // pred_fallthru
          _
        // Predicated region
        $region37: #{tpu_custom_call.1} parent=11 // pred_check
          %p479 = pneg %p233
        $region38: #{tpu_custom_call.1} parent=11 // pred_check_branch
          %481 = sbr.rel (%p479) target = $region40
        $region39: #{tpu_custom_call.1} parent=11 // pred_region
          _
        $region40: #{tpu_custom_call.1} parent=11 // pred_fallthru
          _
        // Predicated region
        $region41: #{tpu_custom_call.1} parent=11 // pred_check
          %p482 = pneg %p254
        $region42: #{tpu_custom_call.1} parent=11 // pred_check_branch
          %484 = sbr.rel (%p482) target = $region44
        $region43: #{tpu_custom_call.1} parent=11 // pred_region
          _
        $region44: #{tpu_custom_call.1} parent=11 // pred_fallthru
          _
        // Predicated region
        $region45: #{tpu_custom_call.1} parent=11 // pred_check
          %p485 = pneg %p275
        $region46: #{tpu_custom_call.1} parent=11 // pred_check_branch
          %487 = sbr.rel (%p485) target = $region48
        $region47: #{tpu_custom_call.1} parent=11 // pred_region
          %489 = vsyncadd [#allocation12], 0
          %s490 = sshll.u32 %s10, 4
          %s491 = int_to_ptr.hbm [resolvable:$true] %s490
          %s492 = sshll.u32 [#allocation13], 4
          %s493 = int_to_ptr.vmem [resolvable:$true] %s492
          %498 = dma.hbm_to_vmem [thread:$0]  %s491, 2048, %s493, [#allocation12], 64, 64, 4
        $region48: #{tpu_custom_call.1} parent=11 // pred_fallthru
          _
        // Predicated region
        $region49: #{tpu_custom_call.1} parent=11 // pred_check
          %p499 = pneg %p296
        $region50: #{tpu_custom_call.1} parent=11 // pred_check_branch
          %501 = sbr.rel (%p499) target = $region52
        $region51: #{tpu_custom_call.1} parent=11 // pred_region
          _
        $region52: #{tpu_custom_call.1} parent=11 // pred_fallthru
          _
        // Predicated region
        $region53: #{tpu_custom_call.1} parent=11 // pred_check
          %p502 = pneg %p317
        $region54: #{tpu_custom_call.1} parent=11 // pred_check_branch
          %504 = sbr.rel (%p502) target = $region56
        $region55: #{tpu_custom_call.1} parent=11 // pred_region
          %506 = vsyncadd [#allocation15], 0
          %s507 = sshll.u32 %s12, 4
          %s508 = int_to_ptr.hbm [resolvable:$true] %s507
          %s509 = sshll.u32 [#allocation14], 4
          %s510 = int_to_ptr.vmem [resolvable:$true] %s509
          %515 = dma.hbm_to_vmem [thread:$0]  %s508, 2048, %s510, [#allocation15], 64, 64, 4
        $region56: #{tpu_custom_call.1} parent=11 // pred_fallthru
          _
        // Predicated region
        $region57: #{tpu_custom_call.1} parent=11 // pred_check
          %p516 = pneg %p338
        $region58: #{tpu_custom_call.1} parent=11 // pred_check_branch
          %518 = sbr.rel (%p516) target = $region60
        $region59: #{tpu_custom_call.1} parent=11 // pred_region
          _
        $region60: #{tpu_custom_call.1} parent=11 // pred_fallthru
          _
        // Predicated region
        $region61: #{tpu_custom_call.1} parent=11 // pred_check
          %p519 = pneg %p359
        $region62: #{tpu_custom_call.1} parent=11 // pred_check_branch
          %521 = sbr.rel (%p519) target = $region64
        $region63: #{tpu_custom_call.1} parent=11 // pred_region
          %523 = vsyncadd [#allocation15], 0
          %s524 = sshll.u32 %s14, 4
          %s525 = int_to_ptr.hbm [resolvable:$true] %s524
          %s526 = sshll.u32 [#allocation16], 4
          %s527 = int_to_ptr.vmem [resolvable:$true] %s526
          %532 = dma.hbm_to_vmem [thread:$0]  %s525, 32, %s527, [#allocation15], 16, 16, 1
        $region64: #{tpu_custom_call.1} parent=11 // pred_fallthru
          _
        // Predicated region
        $region65: #{tpu_custom_call.1} parent=11 // pred_check
          %p533 = pneg %p380
        $region66: #{tpu_custom_call.1} parent=11 // pred_check_branch
          %535 = sbr.rel (%p533) target = $region68
        $region67: #{tpu_custom_call.1} parent=11 // pred_region
          _
        $region68: #{tpu_custom_call.1} parent=11 // pred_fallthru
          _
      $region12: #{tpu_custom_call.1} parent=5 // pred_fallthru
        _
      %p536 = scmp.lt.s32.totalorder %s34, 2
      // Predicated region
      $region69: #{tpu_custom_call.1} parent=5 // pred_check
        %p537 = pneg %p536
      $region70: #{tpu_custom_call.1} parent=5 // pred_check_branch
        %539 = sbr.rel (%p537) target = $region72
      $region71: #{tpu_custom_call.1} parent=5 // pred_region
        // Predicated region
        $region73: #{tpu_custom_call.1} parent=71 // pred_check
          %p540 = pneg %p54
        $region74: #{tpu_custom_call.1} parent=71 // pred_check_branch
          %542 = sbr.rel (%p540) target = $region76
        $region75: #{tpu_custom_call.1} parent=71 // pred_region
          %s543 = sand.u32 %s44, 1
          %s544 = scalar_lea.sflag [#allocation3], %s543
          %s545 = sand.u32 %s44, 1
          %s546 = smul.addr %s545, 8
          %s547 = scalar_lea.vmem [#allocation2], %s546
          %549 = vsyncadd %s544, 0
          %s550 = smul.addr %s34, 8
          %s551 = scalar_lea.hbm %s0, %s550
          %s553 = sshll.u32 %s551, 4
          %s554 = int_to_ptr.hbm [resolvable:$true] %s553
          %s555 = sshll.u32 %s547, 4
          %s556 = int_to_ptr.vmem [resolvable:$true] %s555
          %558 = dma.hbm_to_vmem [thread:$0]  %s554, 128, %s556, %s544
        $region76: #{tpu_custom_call.1} parent=71 // pred_fallthru
          _
        // Predicated region
        $region77: #{tpu_custom_call.1} parent=71 // pred_check
          %p559 = pneg %p80
        $region78: #{tpu_custom_call.1} parent=71 // pred_check_branch
          %561 = sbr.rel (%p559) target = $region80
        $region79: #{tpu_custom_call.1} parent=71 // pred_region
          %s562 = sand.u32 %s34, 1
          %s563 = scalar_lea.sflag [#allocation6], %s562
          %s564 = sand.u32 %s70, 1
          %s565 = scalar_lea.vmem [#allocation5], %s564
          %567 = vsyncadd %s563, 0
          %s568 = scalar_lea.hbm %s1, %s34
          %s570 = sshll.u32 %s568, 4
          %s571 = int_to_ptr.hbm [resolvable:$true] %s570
          %s572 = sshll.u32 %s565, 4
          %s573 = int_to_ptr.vmem [resolvable:$true] %s572
          %575 = dma.hbm_to_vmem [thread:$0]  %s571, 16, %s573, %s563
        $region80: #{tpu_custom_call.1} parent=71 // pred_fallthru
          _
      $region72: #{tpu_custom_call.1} parent=5 // pred_fallthru
        _
      %p576 = scmp.le.s32.totalorder 1, %s34
      %p577 = scmp.lt.s32.totalorder %s34, 3
      %p578 = pnand %p576, %p577
      %p579 = pneg %p578
      // Predicated region
      $region81: #{tpu_custom_call.1} parent=5 // pred_check
        _
      $region82: #{tpu_custom_call.1} parent=5 // pred_check_branch
        %581 = sbr.rel (%p578) target = $region84
      $region83: #{tpu_custom_call.1} parent=5 // pred_region
        %s582 = ssub.s32 %s34, 1
        %s583 = sand.u32 %s47, 1
        %s584 = scalar_lea.sflag [#allocation3], %s583
        %s585 = sand.u32 %s47, 1
        %s586 = smul.addr %s585, 8
        %s587 = scalar_lea.vmem [#allocation2], %s586
        // Predicated region
        $region85: #{tpu_custom_call.1} parent=83 // pred_check
          %p588 = pneg %p60
        $region86: #{tpu_custom_call.1} parent=83 // pred_check_branch
          %590 = sbr.rel (%p588) target = $region88
        $region87: #{tpu_custom_call.1} parent=83 // pred_region
          %592 = dma.done %s584, 128
        $region88: #{tpu_custom_call.1} parent=83 // pred_fallthru
          _
        %s593 = sand.u32 %s39, 1
        %s594 = scalar_lea.sflag [#allocation6], %s593
        %s595 = sand.u32 %s73, 1
        %s596 = scalar_lea.vmem [#allocation5], %s595
        // Predicated region
        $region89: #{tpu_custom_call.1} parent=83 // pred_check
          %p597 = pneg %p86
        $region90: #{tpu_custom_call.1} parent=83 // pred_check_branch
          %599 = sbr.rel (%p597) target = $region92
        $region91: #{tpu_custom_call.1} parent=83 // pred_region
          %601 = dma.done %s594, 16
        $region92: #{tpu_custom_call.1} parent=83 // pred_fallthru
          _
        // Predicated region
        $region93: #{tpu_custom_call.1} parent=83 // pred_check
          %p602 = pneg %p107
        $region94: #{tpu_custom_call.1} parent=83 // pred_check_branch
          %604 = sbr.rel (%p602) target = $region96
        $region95: #{tpu_custom_call.1} parent=83 // pred_region
          %606 = dma.done [#allocation6], 16
        $region96: #{tpu_custom_call.1} parent=83 // pred_fallthru
          _
        // Predicated region
        $region97: #{tpu_custom_call.1} parent=83 // pred_check
          %p607 = pneg %p128
        $region98: #{tpu_custom_call.1} parent=83 // pred_check_branch
          %609 = sbr.rel (%p607) target = $region100
        $region99: #{tpu_custom_call.1} parent=83 // pred_region
          %611 = dma.done [#allocation9], 16
        $region100: #{tpu_custom_call.1} parent=83 // pred_fallthru
          _
        // Predicated region
        $region101: #{tpu_custom_call.1} parent=83 // pred_check
          %p612 = pneg %p149
        $region102: #{tpu_custom_call.1} parent=83 // pred_check_branch
          %614 = sbr.rel (%p612) target = $region104
        $region103: #{tpu_custom_call.1} parent=83 // pred_region
          %616 = dma.done [#allocation9], 2048
        $region104: #{tpu_custom_call.1} parent=83 // pred_fallthru
          _
        // Predicated region
        $region105: #{tpu_custom_call.1} parent=83 // pred_check
          %p617 = pneg %p191
        $region106: #{tpu_custom_call.1} parent=83 // pred_check_branch
          %619 = sbr.rel (%p617) target = $region108
        $region107: #{tpu_custom_call.1} parent=83 // pred_region
          %621 = dma.done [#allocation12], 512
        $region108: #{tpu_custom_call.1} parent=83 // pred_fallthru
          _
        // Predicated region
        $region109: #{tpu_custom_call.1} parent=83 // pred_check
          %p622 = pneg %p275
        $region110: #{tpu_custom_call.1} parent=83 // pred_check_branch
          %624 = sbr.rel (%p622) target = $region112
        $region111: #{tpu_custom_call.1} parent=83 // pred_region
          %626 = dma.done [#allocation12], 2048
        $region112: #{tpu_custom_call.1} parent=83 // pred_fallthru
          _
        // Predicated region
        $region113: #{tpu_custom_call.1} parent=83 // pred_check
          %p627 = pneg %p317
        $region114: #{tpu_custom_call.1} parent=83 // pred_check_branch
          %629 = sbr.rel (%p627) target = $region116
        $region115: #{tpu_custom_call.1} parent=83 // pred_region
          %631 = dma.done [#allocation15], 2048
        $region116: #{tpu_custom_call.1} parent=83 // pred_fallthru
          _
        // Predicated region
        $region117: #{tpu_custom_call.1} parent=83 // pred_check
          %p632 = pneg %p359
        $region118: #{tpu_custom_call.1} parent=83 // pred_check_branch
          %634 = sbr.rel (%p632) target = $region120
        $region119: #{tpu_custom_call.1} parent=83 // pred_region
          %636 = dma.done [#allocation15], 32
        $region120: #{tpu_custom_call.1} parent=83 // pred_fallthru
          _
        %s637 = sand.u32 %s47, 1
        %s638 = scalar_lea.sflag [#allocation3], %s637
        %s639 = sand.u32 %s47, 1
        %s640 = smul.addr %s639, 8
        %s641 = scalar_lea.vmem [#allocation2], %s640
        %p642 = pneg %p60
        %p643 = pneg %p57
        %s644 = sand.u32 %s39, 1
        %s645 = scalar_lea.sflag [#allocation6], %s644
        %s646 = sand.u32 %s73, 1
        %s647 = scalar_lea.vmem [#allocation5], %s646
        %p648 = pneg %p86
        %p649 = pneg %p83
        %p650 = pneg %p107
        %p651 = pneg %p104
        %p652 = pneg %p128
        %p653 = pneg %p125
        %p654 = pneg %p149
        %p655 = pneg %p146
        %p656 = pneg %p170
        %p657 = pneg %p167
        %p658 = pneg %p191
        %p659 = pneg %p188
        %p660 = pneg %p212
        %p661 = pneg %p209
        %p662 = pneg %p233
        %p663 = pneg %p230
        %p664 = pneg %p254
        %p665 = pneg %p251
        %p666 = pneg %p275
        %p667 = pneg %p272
        %p668 = pneg %p296
        %p669 = pneg %p293
        %p670 = pneg %p317
        %p671 = pneg %p314
        %p672 = pneg %p338
        %p673 = pneg %p335
        %p674 = pneg %p359
        %p675 = pneg %p356
        %p676 = pneg %p380
        %p677 = pneg %p377
        %p678 = pneg %p406
        %p679 = pneg %p403
        %s680 = sand.u32 %s393, 1
        %s681 = scalar_lea.sflag [#allocation4], %s680
        %s682 = sand.u32 %s393, 1
        %s683 = smul.addr %s682, 8
        %s684 = scalar_lea.vmem [#allocation17], %s683
        %v686 = vlaneseq
        %v687 = vand.u32 %v686, 127
        %vm688 = vcmp.lt.s32.totalorder %v687, 32
        %v689 = vsel %vm688, 1, 0
        %v690 = vcvt.s32.f32 %v689
        %v691 = vld [vmem:[%s596] sm:$0x1]
        %v692 = vld [vmem:[%s587] sm:$0xff]
        %v693 = vld [vmem:[#allocation7] sm:$0x1]
        %v694 = vld [vmem:[#allocation8] sm:$0x1]
        %v695 = vmul.f32 %v692, %v690
        %696 = vadd.xlane.f32.xlu0 %v695
        %v697 = vpop.xlane.xlu0 %696
        %v698 = vmul.f32 %v697, 0.03125
        %v699 = vsub.f32 %v692, %v698
        %v700 = vmul.f32 %v699, %v690
        %v701 = vmul.f32 %v700, %v700
        %702 = vadd.xlane.f32.xlu0 %v701
        %v703 = vpop.xlane.xlu0 %702
        %v704 = vmul.f32 %v703, 0.03125
        %v705 = vadd.f32 %v704, 1e-05
        %v706 = vrsqrt.pop %v705
        %v707 = vmul.f32 %v706, %v705
        %v708 = vmul.f32 %v707, %v706
        %v709 = vmul.f32 0.5, %v708
        %v710 = vsub.f32 1.5, %v709
        %v711 = vmul.f32 %v706, %v710
        %vm712 = vweird.f32 %v705
        %vm713 = vweird.f32 %v706
        %vm714 = vmor %vm712, %vm713
        %v715 = vsel %vm714, %v706, %v711
        %v716 = vmul.f32 %v700, %v715
        %v718 = vperm.slane %v693, 0
        %v720 = vmul.f32 %v716, %v718
        %v722 = vperm.slane %v694, 0
        %v724 = vadd.f32 %v720, %v722
        %v725 = vpack.c.bf16 %v724, %v724
        %v726 = vld [vmem:[#allocation10] sm:$0xf]
        %v727 = vld [vmem:[#allocation10 + $0x4] sm:$0xf]
        %v728 = vld [vmem:[#allocation10 + $0x8] sm:$0xf]
        %v729 = vld [vmem:[#allocation10 + $0xc] sm:$0xf]
        %v730 = vld [vmem:[#allocation10 + $0x10] sm:$0xf]
        %v731 = vld [vmem:[#allocation10 + $0x14] sm:$0xf]
        %v732 = vld [vmem:[#allocation10 + $0x18] sm:$0xf]
        %v733 = vld [vmem:[#allocation10 + $0x1c] sm:$0xf]
        %v734 = vld [vmem:[#allocation10 + $0x20] sm:$0xf]
        %v735 = vld [vmem:[#allocation10 + $0x24] sm:$0xf]
        %v736 = vld [vmem:[#allocation10 + $0x28] sm:$0xf]
        %v737 = vld [vmem:[#allocation10 + $0x2c] sm:$0xf]
        %v738 = vld [vmem:[#allocation10 + $0x30] sm:$0xf]
        %v739 = vld [vmem:[#allocation10 + $0x34] sm:$0xf]
        %v740 = vld [vmem:[#allocation10 + $0x38] sm:$0xf]
        %v741 = vld [vmem:[#allocation10 + $0x3c] sm:$0xf]
        %v742 = vld [vmem:[%s5] sm:$0x1]
        %v744 = vperm.slane %v742, 0
        %v762 = vunpack.c.l.b16 %v726
        %v763 = vunpack.c.l.b16 %v727
        %v764 = vunpack.c.l.b16 %v728
        %v765 = vunpack.c.l.b16 %v729
        %v766 = vunpack.c.l.b16 %v730
        %v767 = vunpack.c.l.b16 %v731
        %v768 = vunpack.c.l.b16 %v732
        %v769 = vunpack.c.l.b16 %v733
        %v770 = vunpack.c.l.b16 %v734
        %v771 = vunpack.c.l.b16 %v735
        %v772 = vunpack.c.l.b16 %v736
        %v773 = vunpack.c.l.b16 %v737
        %v774 = vunpack.c.l.b16 %v738
        %v775 = vunpack.c.l.b16 %v739
        %v776 = vunpack.c.l.b16 %v740
        %v777 = vunpack.c.l.b16 %v741
        %v778 = vpack.c.b16 %v763, %v762
        %v779 = vpack.c.b16 %v765, %v764
        %v780 = vpack.c.b16 %v767, %v766
        %v781 = vpack.c.b16 %v769, %v768
        %v782 = vpack.c.b16 %v771, %v770
        %v783 = vpack.c.b16 %v773, %v772
        %v784 = vpack.c.b16 %v775, %v774
        %v785 = vpack.c.b16 %v777, %v776
        %794 = vmatpush.bf16.msra.mxu0 %v785
        %795 = vmatpush.bf16.msra.mxu0 %v784
        %796 = vmatpush.bf16.msra.mxu0 %v783
        %797 = vmatpush.bf16.msra.mxu0 %v782
        %798 = vmatpush.bf16.msra.mxu0 %v781
        %799 = vmatpush.bf16.msra.mxu0 %v780
        %800 = vmatpush.bf16.msra.mxu0 %v779
        %801 = vmatpush.bf16.msra.mxu0 %v778
        %802 = vmatmul.bf16.gmra.mxu0 %v725
        %v803 = vpop.f32.mrf.mxu0
        %v804 = vadd.f32 %v744, %v803
        %v805 = vpop.f32.mrf.mxu0
        %806 = vdwg.mxu0
        %808 = vrot.lane.b32.xlu0 %v804, 120
        %v809 = vpop.permute.xlu0 %808
        %811 = vrot.lane.b32.xlu0 %v804, 112
        %v812 = vpop.permute.xlu0 %811
        %814 = vrot.lane.b32.xlu0 %v804, 104
        %v815 = vpop.permute.xlu0 %814
        %v817 = vpack.c.bf16 %v804, %v804
        %v818 = vpack.c.bf16 %v809, %v809
        %v819 = vpack.c.bf16 %v812, %v812
        %v820 = vpack.c.bf16 %v815, %v815
        %v822 = vperm.slane %v691, 0
        %v825 = vunpack.c.l.b16 %v817
        %v826 = vpack.c.b16 %v825, %v825
        %827 = vrot.lane.b32.xlu0 %v826, 96
        %v828 = vpop.permute.xlu0 %827
        %vm829 = vcmask 64512
        %v831 = vsel %vm829, %v817, 0
        %v834 = vsel %vm829, %v828, 0
        %836 = vmatpush.bf16.xpose.msra.mxu0 0
        %837 = vmatpush.bf16.xpose.msra.mxu0 0
        %838 = vmatpush.bf16.xpose.msra.mxu0 0
        %839 = vmatpush.bf16.xpose.msra.mxu0 0
        %840 = vmatpush.bf16.xpose.msra.mxu0 0
        %841 = vmatpush.bf16.xpose.msra.mxu0 0
        %842 = vmatpush.bf16.xpose.msra.mxu0 0
        %843 = vmatpush.bf16.xpose.msra.mxu0 %v834
        %844 = vmatmul.bf16.gmra.mxu0 %v831
        %v845 = vpop.f32.mrf.mxu0
        %v846 = vadd.f32 %v822, %v845
        %v847 = vpop.f32.mrf.mxu0
        %848 = vdwg.mxu0
        %v850 = vunpack.c.l.b16 %v818
        %v851 = vpack.c.b16 %v850, %v850
        %852 = vrot.lane.b32.xlu0 %v851, 96
        %v853 = vpop.permute.xlu0 %852
        %v855 = vsel %vm829, %v818, 0
        %v858 = vsel %vm829, %v853, 0
        %860 = vmatpush.bf16.xpose.msra.mxu0 0
        %861 = vmatpush.bf16.xpose.msra.mxu0 0
        %862 = vmatpush.bf16.xpose.msra.mxu0 0
        %863 = vmatpush.bf16.xpose.msra.mxu0 0
        %864 = vmatpush.bf16.xpose.msra.mxu0 0
        %865 = vmatpush.bf16.xpose.msra.mxu0 0
        %866 = vmatpush.bf16.xpose.msra.mxu0 0
        %867 = vmatpush.bf16.xpose.msra.mxu0 %v858
        %868 = vmatmul.bf16.gmra.mxu0 %v855
        %v869 = vpop.f32.mrf.mxu0
        %v870 = vadd.f32 %v822, %v869
        %v871 = vpop.f32.mrf.mxu0
        %872 = vdwg.mxu0
        %v874 = vunpack.c.l.b16 %v819
        %v875 = vpack.c.b16 %v874, %v874
        %876 = vrot.lane.b32.xlu0 %v875, 96
        %v877 = vpop.permute.xlu0 %876
        %v879 = vsel %vm829, %v819, 0
        %v882 = vsel %vm829, %v877, 0
        %884 = vmatpush.bf16.xpose.msra.mxu0 0
        %885 = vmatpush.bf16.xpose.msra.mxu0 0
        %886 = vmatpush.bf16.xpose.msra.mxu0 0
        %887 = vmatpush.bf16.xpose.msra.mxu0 0
        %888 = vmatpush.bf16.xpose.msra.mxu0 0
        %889 = vmatpush.bf16.xpose.msra.mxu0 0
        %890 = vmatpush.bf16.xpose.msra.mxu0 0
        %891 = vmatpush.bf16.xpose.msra.mxu0 %v882
        %892 = vmatmul.bf16.gmra.mxu0 %v879
        %v893 = vpop.f32.mrf.mxu0
        %v894 = vadd.f32 %v822, %v893
        %v895 = vpop.f32.mrf.mxu0
        %896 = vdwg.mxu0
        %v898 = vunpack.c.l.b16 %v820
        %v899 = vpack.c.b16 %v898, %v898
        %900 = vrot.lane.b32.xlu0 %v899, 96
        %v901 = vpop.permute.xlu0 %900
        %v903 = vsel %vm829, %v820, 0
        %v906 = vsel %vm829, %v901, 0
        %908 = vmatpush.bf16.xpose.msra.mxu0 0
        %909 = vmatpush.bf16.xpose.msra.mxu0 0
        %910 = vmatpush.bf16.xpose.msra.mxu0 0
        %911 = vmatpush.bf16.xpose.msra.mxu0 0
        %912 = vmatpush.bf16.xpose.msra.mxu0 0
        %913 = vmatpush.bf16.xpose.msra.mxu0 0
        %914 = vmatpush.bf16.xpose.msra.mxu0 0
        %915 = vmatpush.bf16.xpose.msra.mxu0 %v906
        %916 = vmatmul.bf16.gmra.mxu0 %v903
        %v917 = vpop.f32.mrf.mxu0
        %v918 = vadd.f32 %v822, %v917
        %v919 = vpop.f32.mrf.mxu0
        %920 = vdwg.mxu0
        %v921 = vsel %vm829, %v846, -inf
        %922 = vmax.xlane.f32.xlu0 %v921
        %v923 = vpop.xlane.xlu0 %922
        %v924 = vsel %vm829, %v870, -inf
        %925 = vmax.xlane.f32.xlu0 %v924
        %v926 = vpop.xlane.xlu0 %925
        %v927 = vsel %vm829, %v894, -inf
        %928 = vmax.xlane.f32.xlu0 %v927
        %v929 = vpop.xlane.xlu0 %928
        %v930 = vsel %vm829, %v918, -inf
        %931 = vmax.xlane.f32.xlu0 %v930
        %v932 = vpop.xlane.xlu0 %931
        %v933 = vsub.f32 %v846, %v923
        %v934 = vsub.f32 %v870, %v926
        %v935 = vsub.f32 %v894, %v929
        %v936 = vsub.f32 %v918, %v932
        %v937 = vmul.f32 %v933, 1.442695
        %v938 = vpow.pop %v937
        %v939 = vmul.f32 %v934, 1.442695
        %v940 = vpow.pop %v939
        %v941 = vmul.f32 %v935, 1.442695
        %v942 = vpow.pop %v941
        %v943 = vmul.f32 %v936, 1.442695
        %v944 = vpow.pop %v943
        %v945 = vsel %vm829, %v938, 0.0
        %946 = vadd.xlane.f32.xlu0 %v945
        %v947 = vpop.xlane.xlu0 %946
        %v948 = vsel %vm829, %v940, 0.0
        %949 = vadd.xlane.f32.xlu0 %v948
        %v950 = vpop.xlane.xlu0 %949
        %v951 = vsel %vm829, %v942, 0.0
        %952 = vadd.xlane.f32.xlu0 %v951
        %v953 = vpop.xlane.xlu0 %952
        %v954 = vsel %vm829, %v944, 0.0
        %955 = vadd.xlane.f32.xlu0 %v954
        %v956 = vpop.xlane.xlu0 %955
        %v957 = vrcp.pop %v947
        %v958 = vrcp.pop %v950
        %v959 = vrcp.pop %v953
        %v960 = vrcp.pop %v956
        %v961 = vmul.f32 %v938, %v957
        %v962 = vmul.f32 %v940, %v958
        %v963 = vmul.f32 %v942, %v959
        %v964 = vmul.f32 %v944, %v960
        %v965 = vpack.c.bf16 %v961, %v961
        %v966 = vpack.c.bf16 %v962, %v962
        %v967 = vpack.c.bf16 %v963, %v963
        %v968 = vpack.c.bf16 %v964, %v964
        %969 = vrot.lane.b32.xlu0 %v826, 64
        %v970 = vpop.permute.xlu0 %969
        %v972 = vsel %vm829, %v965, 0
        %vm974 = vcmask 1043456
        %v976 = vsel %vm974, %v970, 0
        %978 = vmatpush.bf16.msra.mxu0 0
        %979 = vmatpush.bf16.msra.mxu0 0
        %980 = vmatpush.bf16.msra.mxu0 0
        %981 = vmatpush.bf16.msra.mxu0 0
        %982 = vmatpush.bf16.msra.mxu0 0
        %983 = vmatpush.bf16.msra.mxu0 0
        %984 = vmatpush.bf16.msra.mxu0 0
        %985 = vmatpush.bf16.msra.mxu0 %v976
        %986 = vmatmul.bf16.gmra.mxu0 %v972
        %v987 = vpop.f32.mrf.mxu0
        %v988 = vadd.f32 0.0, %v987
        %v989 = vpop.f32.mrf.mxu0
        %990 = vdwg.mxu0
        %991 = vrot.lane.b32.xlu0 %v851, 64
        %v992 = vpop.permute.xlu0 %991
        %v994 = vsel %vm829, %v966, 0
        %v997 = vsel %vm974, %v992, 0
        %999 = vmatpush.bf16.msra.mxu0 0
        %1000 = vmatpush.bf16.msra.mxu0 0
        %1001 = vmatpush.bf16.msra.mxu0 0
        %1002 = vmatpush.bf16.msra.mxu0 0
        %1003 = vmatpush.bf16.msra.mxu0 0
        %1004 = vmatpush.bf16.msra.mxu0 0
        %1005 = vmatpush.bf16.msra.mxu0 0
        %1006 = vmatpush.bf16.msra.mxu0 %v997
        %1007 = vmatmul.bf16.gmra.mxu0 %v994
        %v1008 = vpop.f32.mrf.mxu0
        %v1009 = vadd.f32 0.0, %v1008
        %v1010 = vpop.f32.mrf.mxu0
        %1011 = vdwg.mxu0
        %1012 = vrot.lane.b32.xlu0 %v875, 64
        %v1013 = vpop.permute.xlu0 %1012
        %v1015 = vsel %vm829, %v967, 0
        %v1018 = vsel %vm974, %v1013, 0
        %1020 = vmatpush.bf16.msra.mxu0 0
        %1021 = vmatpush.bf16.msra.mxu0 0
        %1022 = vmatpush.bf16.msra.mxu0 0
        %1023 = vmatpush.bf16.msra.mxu0 0
        %1024 = vmatpush.bf16.msra.mxu0 0
        %1025 = vmatpush.bf16.msra.mxu0 0
        %1026 = vmatpush.bf16.msra.mxu0 0
        %1027 = vmatpush.bf16.msra.mxu0 %v1018
        %1028 = vmatmul.bf16.gmra.mxu0 %v1015
        %v1029 = vpop.f32.mrf.mxu0
        %v1030 = vadd.f32 0.0, %v1029
        %v1031 = vpop.f32.mrf.mxu0
        %1032 = vdwg.mxu0
        %1033 = vrot.lane.b32.xlu0 %v899, 64
        %v1034 = vpop.permute.xlu0 %1033
        %v1036 = vsel %vm829, %v968, 0
        %v1039 = vsel %vm974, %v1034, 0
        %1041 = vmatpush.bf16.msra.mxu0 0
        %1042 = vmatpush.bf16.msra.mxu0 0
        %1043 = vmatpush.bf16.msra.mxu0 0
        %1044 = vmatpush.bf16.msra.mxu0 0
        %1045 = vmatpush.bf16.msra.mxu0 0
        %1046 = vmatpush.bf16.msra.mxu0 0
        %1047 = vmatpush.bf16.msra.mxu0 0
        %1048 = vmatpush.bf16.msra.mxu0 %v1039
        %1049 = vmatmul.bf16.gmra.mxu0 %v1036
        %v1050 = vpop.f32.mrf.mxu0
        %v1051 = vadd.f32 0.0, %v1050
        %v1052 = vpop.f32.mrf.mxu0
        %1053 = vdwg.mxu0
        %v1054 = vpack.c.bf16 %v988, %v988
        %v1055 = vpack.c.bf16 %v1009, %v1009
        %v1056 = vpack.c.bf16 %v1030, %v1030
        %v1057 = vpack.c.bf16 %v1051, %v1051
        %v1058 = vld [vmem:[#allocation11] sm:$0xf]
        %v1059 = vld [vmem:[#allocation11 + $0x4] sm:$0xf]
        %v1060 = vld [vmem:[#allocation11 + $0x8] sm:$0xf]
        %v1061 = vld [vmem:[#allocation11 + $0xc] sm:$0xf]
        %v1063 = vsel %vm829, %v1054, 0
        %v1066 = vsel %vm974, %v1058, 0
        %1068 = vmatpush.bf16.msra.mxu0 0
        %1069 = vmatpush.bf16.msra.mxu0 0
        %1070 = vmatpush.bf16.msra.mxu0 0
        %1071 = vmatpush.bf16.msra.mxu0 0
        %1072 = vmatpush.bf16.msra.mxu0 0
        %1073 = vmatpush.bf16.msra.mxu0 0
        %1074 = vmatpush.bf16.msra.mxu0 0
        %1075 = vmatpush.bf16.msra.mxu0 %v1066
        %1076 = vmatmul.bf16.gmra.mxu0 %v1063
        %v1077 = vpop.f32.mrf.mxu0
        %v1078 = vadd.f32 0.0, %v1077
        %v1079 = vpop.f32.mrf.mxu0
        %1080 = vdwg.mxu0
        %v1082 = vsel %vm829, %v1055, 0
        %v1085 = vsel %vm974, %v1059, 0
        %1087 = vmatpush.bf16.msra.mxu0 0
        %1088 = vmatpush.bf16.msra.mxu0 0
        %1089 = vmatpush.bf16.msra.mxu0 0
        %1090 = vmatpush.bf16.msra.mxu0 0
        %1091 = vmatpush.bf16.msra.mxu0 0
        %1092 = vmatpush.bf16.msra.mxu0 0
        %1093 = vmatpush.bf16.msra.mxu0 0
        %1094 = vmatpush.bf16.msra.mxu0 %v1085
        %1095 = vmatmul.bf16.gmra.mxu0 %v1082
        %v1096 = vpop.f32.mrf.mxu0
        %v1097 = vadd.f32 0.0, %v1096
        %v1098 = vpop.f32.mrf.mxu0
        %1099 = vdwg.mxu0
        %v1101 = vsel %vm829, %v1056, 0
        %v1104 = vsel %vm974, %v1060, 0
        %1106 = vmatpush.bf16.msra.mxu0 0
        %1107 = vmatpush.bf16.msra.mxu0 0
        %1108 = vmatpush.bf16.msra.mxu0 0
        %1109 = vmatpush.bf16.msra.mxu0 0
        %1110 = vmatpush.bf16.msra.mxu0 0
        %1111 = vmatpush.bf16.msra.mxu0 0
        %1112 = vmatpush.bf16.msra.mxu0 0
        %1113 = vmatpush.bf16.msra.mxu0 %v1104
        %1114 = vmatmul.bf16.gmra.mxu0 %v1101
        %v1115 = vpop.f32.mrf.mxu0
        %v1116 = vadd.f32 0.0, %v1115
        %v1117 = vpop.f32.mrf.mxu0
        %1118 = vdwg.mxu0
        %v1120 = vsel %vm829, %v1057, 0
        %v1123 = vsel %vm974, %v1061, 0
        %1125 = vmatpush.bf16.msra.mxu0 0
        %1126 = vmatpush.bf16.msra.mxu0 0
        %1127 = vmatpush.bf16.msra.mxu0 0
        %1128 = vmatpush.bf16.msra.mxu0 0
        %1129 = vmatpush.bf16.msra.mxu0 0
        %1130 = vmatpush.bf16.msra.mxu0 0
        %1131 = vmatpush.bf16.msra.mxu0 0
        %1132 = vmatpush.bf16.msra.mxu0 %v1123
        %1133 = vmatmul.bf16.gmra.mxu0 %v1120
        %v1134 = vpop.f32.mrf.mxu0
        %v1135 = vadd.f32 0.0, %v1134
        %v1136 = vpop.f32.mrf.mxu0
        %1137 = vdwg.mxu0
        %v1138 = vadd.f32 %v1078, %v1097
        %v1139 = vadd.f32 %v1138, %v1116
        %v1140 = vadd.f32 %v1139, %v1135
        %v1141 = vld [vmem:[%s7] sm:$0x1]
        %v1143 = vperm.slane %v1141, 0
        %v1145 = vadd.f32 %v1140, %v1143
        %v1146 = vadd.f32 %v724, %v1145
        %v1147 = vld [vmem:[%s8] sm:$0x1]
        %v1148 = vld [vmem:[%s9] sm:$0x1]
        %v1149 = vmul.f32 %v1146, %v690
        %1150 = vadd.xlane.f32.xlu0 %v1149
        %v1151 = vpop.xlane.xlu0 %1150
        %v1152 = vmul.f32 %v1151, 0.03125
        %v1153 = vsub.f32 %v1146, %v1152
        %v1154 = vmul.f32 %v1153, %v690
        %v1155 = vmul.f32 %v1154, %v1154
        %1156 = vadd.xlane.f32.xlu0 %v1155
        %v1157 = vpop.xlane.xlu0 %1156
        %v1158 = vmul.f32 %v1157, 0.03125
        %v1159 = vadd.f32 %v1158, 1e-05
        %v1160 = vrsqrt.pop %v1159
        %v1161 = vmul.f32 %v1160, %v1159
        %v1162 = vmul.f32 %v1161, %v1160
        %v1163 = vmul.f32 0.5, %v1162
        %v1164 = vsub.f32 1.5, %v1163
        %v1165 = vmul.f32 %v1160, %v1164
        %vm1166 = vweird.f32 %v1159
        %vm1167 = vweird.f32 %v1160
        %vm1168 = vmor %vm1166, %vm1167
        %v1169 = vsel %vm1168, %v1160, %v1165
        %v1170 = vmul.f32 %v1154, %v1169
        %v1172 = vperm.slane %v1147, 0
        %v1174 = vmul.f32 %v1170, %v1172
        %v1176 = vperm.slane %v1148, 0
        %v1178 = vadd.f32 %v1174, %v1176
        %v1179 = vpack.c.bf16 %v1178, %v1178
        %v1180 = vld [vmem:[#allocation13] sm:$0xf]
        %v1181 = vld [vmem:[#allocation13 + $0x4] sm:$0xf]
        %v1182 = vld [vmem:[#allocation13 + $0x8] sm:$0xf]
        %v1183 = vld [vmem:[#allocation13 + $0xc] sm:$0xf]
        %v1184 = vld [vmem:[#allocation13 + $0x10] sm:$0xf]
        %v1185 = vld [vmem:[#allocation13 + $0x14] sm:$0xf]
        %v1186 = vld [vmem:[#allocation13 + $0x18] sm:$0xf]
        %v1187 = vld [vmem:[#allocation13 + $0x1c] sm:$0xf]
        %v1188 = vld [vmem:[#allocation13 + $0x20] sm:$0xf]
        %v1189 = vld [vmem:[#allocation13 + $0x24] sm:$0xf]
        %v1190 = vld [vmem:[#allocation13 + $0x28] sm:$0xf]
        %v1191 = vld [vmem:[#allocation13 + $0x2c] sm:$0xf]
        %v1192 = vld [vmem:[#allocation13 + $0x30] sm:$0xf]
        %v1193 = vld [vmem:[#allocation13 + $0x34] sm:$0xf]
        %v1194 = vld [vmem:[#allocation13 + $0x38] sm:$0xf]
        %v1195 = vld [vmem:[#allocation13 + $0x3c] sm:$0xf]
        %v1196 = vld [vmem:[%s11] sm:$0x1]
        %v1198 = vperm.slane %v1196, 0
        %v1216 = vunpack.c.l.b16 %v1180
        %v1217 = vunpack.c.l.b16 %v1181
        %v1218 = vunpack.c.l.b16 %v1182
        %v1219 = vunpack.c.l.b16 %v1183
        %v1220 = vunpack.c.l.b16 %v1184
        %v1221 = vunpack.c.l.b16 %v1185
        %v1222 = vunpack.c.l.b16 %v1186
        %v1223 = vunpack.c.l.b16 %v1187
        %v1224 = vunpack.c.l.b16 %v1188
        %v1225 = vunpack.c.l.b16 %v1189
        %v1226 = vunpack.c.l.b16 %v1190
        %v1227 = vunpack.c.l.b16 %v1191
        %v1228 = vunpack.c.l.b16 %v1192
        %v1229 = vunpack.c.l.b16 %v1193
        %v1230 = vunpack.c.l.b16 %v1194
        %v1231 = vunpack.c.l.b16 %v1195
        %v1232 = vpack.c.b16 %v1217, %v1216
        %v1233 = vpack.c.b16 %v1219, %v1218
        %v1234 = vpack.c.b16 %v1221, %v1220
        %v1235 = vpack.c.b16 %v1223, %v1222
        %v1236 = vpack.c.b16 %v1225, %v1224
        %v1237 = vpack.c.b16 %v1227, %v1226
        %v1238 = vpack.c.b16 %v1229, %v1228
        %v1239 = vpack.c.b16 %v1231, %v1230
        %1248 = vmatpush.bf16.msra.mxu0 %v1239
        %1249 = vmatpush.bf16.msra.mxu0 %v1238
        %1250 = vmatpush.bf16.msra.mxu0 %v1237
        %1251 = vmatpush.bf16.msra.mxu0 %v1236
        %1252 = vmatpush.bf16.msra.mxu0 %v1235
        %1253 = vmatpush.bf16.msra.mxu0 %v1234
        %1254 = vmatpush.bf16.msra.mxu0 %v1233
        %1255 = vmatpush.bf16.msra.mxu0 %v1232
        %1256 = vmatmul.bf16.gmra.mxu0 %v1179
        %v1257 = vpop.f32.mrf.mxu0
        %v1258 = vadd.f32 %v1198, %v1257
        %v1259 = vpop.f32.mrf.mxu0
        %1260 = vdwg.mxu0
        %v1261 = vmul.f32 %v1258, 0.5
        %v1262 = vmul.f32 %v1258, 0.044715
        %v1263 = vmul.f32 %v1262, %v1258
        %v1264 = vmul.f32 %v1263, %v1258
        %v1265 = vadd.f32 %v1258, %v1264
        %v1266 = vmul.f32 %v1265, 0.7978846
        %v1267 = vtanh.pop %v1266
        %v1268 = vadd.f32 %v1267, 1.0
        %v1269 = vmul.f32 %v1261, %v1268
        %v1270 = vpack.c.bf16 %v1269, %v1269
        %v1271 = vld [vmem:[#allocation14] sm:$0xf]
        %v1272 = vld [vmem:[#allocation14 + $0x4] sm:$0xf]
        %v1273 = vld [vmem:[#allocation14 + $0x8] sm:$0xf]
        %v1274 = vld [vmem:[#allocation14 + $0xc] sm:$0xf]
        %v1275 = vld [vmem:[#allocation14 + $0x10] sm:$0xf]
        %v1276 = vld [vmem:[#allocation14 + $0x14] sm:$0xf]
        %v1277 = vld [vmem:[#allocation14 + $0x18] sm:$0xf]
        %v1278 = vld [vmem:[#allocation14 + $0x1c] sm:$0xf]
        %v1279 = vld [vmem:[#allocation14 + $0x20] sm:$0xf]
        %v1280 = vld [vmem:[#allocation14 + $0x24] sm:$0xf]
        %v1281 = vld [vmem:[#allocation14 + $0x28] sm:$0xf]
        %v1282 = vld [vmem:[#allocation14 + $0x2c] sm:$0xf]
        %v1283 = vld [vmem:[#allocation14 + $0x30] sm:$0xf]
        %v1284 = vld [vmem:[#allocation14 + $0x34] sm:$0xf]
        %v1285 = vld [vmem:[#allocation14 + $0x38] sm:$0xf]
        %v1286 = vld [vmem:[#allocation14 + $0x3c] sm:$0xf]
        %v1287 = vld [vmem:[%s13] sm:$0x1]
        %v1289 = vperm.slane %v1287, 0
        %v1307 = vunpack.c.l.b16 %v1271
        %v1308 = vunpack.c.l.b16 %v1272
        %v1309 = vunpack.c.l.b16 %v1273
        %v1310 = vunpack.c.l.b16 %v1274
        %v1311 = vunpack.c.l.b16 %v1275
        %v1312 = vunpack.c.l.b16 %v1276
        %v1313 = vunpack.c.l.b16 %v1277
        %v1314 = vunpack.c.l.b16 %v1278
        %v1315 = vunpack.c.l.b16 %v1279
        %v1316 = vunpack.c.l.b16 %v1280
        %v1317 = vunpack.c.l.b16 %v1281
        %v1318 = vunpack.c.l.b16 %v1282
        %v1319 = vunpack.c.l.b16 %v1283
        %v1320 = vunpack.c.l.b16 %v1284
        %v1321 = vunpack.c.l.b16 %v1285
        %v1322 = vunpack.c.l.b16 %v1286
        %v1323 = vpack.c.b16 %v1308, %v1307
        %v1324 = vpack.c.b16 %v1310, %v1309
        %v1325 = vpack.c.b16 %v1312, %v1311
        %v1326 = vpack.c.b16 %v1314, %v1313
        %v1327 = vpack.c.b16 %v1316, %v1315
        %v1328 = vpack.c.b16 %v1318, %v1317
        %v1329 = vpack.c.b16 %v1320, %v1319
        %v1330 = vpack.c.b16 %v1322, %v1321
        %1339 = vmatpush.bf16.msra.mxu0 %v1330
        %1340 = vmatpush.bf16.msra.mxu0 %v1329
        %1341 = vmatpush.bf16.msra.mxu0 %v1328
        %1342 = vmatpush.bf16.msra.mxu0 %v1327
        %1343 = vmatpush.bf16.msra.mxu0 %v1326
        %1344 = vmatpush.bf16.msra.mxu0 %v1325
        %1345 = vmatpush.bf16.msra.mxu0 %v1324
        %1346 = vmatpush.bf16.msra.mxu0 %v1323
        %1347 = vmatmul.bf16.gmra.mxu0 %v1270
        %v1348 = vpop.f32.mrf.mxu0
        %v1349 = vadd.f32 %v1289, %v1348
        %v1350 = vpop.f32.mrf.mxu0
        %1351 = vdwg.mxu0
        %v1352 = vadd.f32 %v1178, %v1349
        %v1353 = vld [vmem:[#allocation16] sm:$0x1]
        %v1354 = vld [vmem:[%s15] sm:$0x1]
        %v1355 = vmul.f32 %v1352, %v690
        %1356 = vadd.xlane.f32.xlu0 %v1355
        %v1357 = vpop.xlane.xlu0 %1356
        %v1358 = vmul.f32 %v1357, 0.03125
        %v1359 = vsub.f32 %v1352, %v1358
        %v1360 = vmul.f32 %v1359, %v690
        %v1361 = vmul.f32 %v1360, %v1360
        %1362 = vadd.xlane.f32.xlu0 %v1361
        %v1363 = vpop.xlane.xlu0 %1362
        %v1364 = vmul.f32 %v1363, 0.03125
        %v1365 = vadd.f32 %v1364, 1e-05
        %v1366 = vrsqrt.pop %v1365
        %v1367 = vmul.f32 %v1366, %v1365
        %v1368 = vmul.f32 %v1367, %v1366
        %v1369 = vmul.f32 0.5, %v1368
        %v1370 = vsub.f32 1.5, %v1369
        %v1371 = vmul.f32 %v1366, %v1370
        %vm1372 = vweird.f32 %v1365
        %vm1373 = vweird.f32 %v1366
        %vm1374 = vmor %vm1372, %vm1373
        %v1375 = vsel %vm1374, %v1366, %v1371
        %v1376 = vmul.f32 %v1360, %v1375
        %v1378 = vperm.slane %v1353, 0
        %v1380 = vmul.f32 %v1376, %v1378
        %v1382 = vperm.slane %v1354, 0
        %v1384 = vadd.f32 %v1380, %v1382
        %v1385 = vpack.c.bf16 %v1384, %v1384
        %s1386 = scalar_lea.vmem [#allocation10], 64
        %v1387 = vld [vmem:[%s1386] sm:$0xf]
        %v1388 = vld [vmem:[%s1386 + $0x4] sm:$0xf]
        %v1389 = vld [vmem:[%s1386 + $0x8] sm:$0xf]
        %v1390 = vld [vmem:[%s1386 + $0xc] sm:$0xf]
        %v1391 = vld [vmem:[%s1386 + $0x10] sm:$0xf]
        %v1392 = vld [vmem:[%s1386 + $0x14] sm:$0xf]
        %v1393 = vld [vmem:[%s1386 + $0x18] sm:$0xf]
        %v1394 = vld [vmem:[%s1386 + $0x1c] sm:$0xf]
        %v1395 = vld [vmem:[%s1386 + $0x20] sm:$0xf]
        %v1396 = vld [vmem:[%s1386 + $0x24] sm:$0xf]
        %v1397 = vld [vmem:[%s1386 + $0x28] sm:$0xf]
        %v1398 = vld [vmem:[%s1386 + $0x2c] sm:$0xf]
        %v1399 = vld [vmem:[%s1386 + $0x30] sm:$0xf]
        %v1400 = vld [vmem:[%s1386 + $0x34] sm:$0xf]
        %v1401 = vld [vmem:[%s1386 + $0x38] sm:$0xf]
        %v1402 = vld [vmem:[%s1386 + $0x3c] sm:$0xf]
        %s1403 = scalar_lea.vmem %s5, 1
        %v1404 = vld [vmem:[%s1403] sm:$0x1]
        %v1406 = vperm.slane %v1404, 0
        %v1424 = vunpack.c.l.b16 %v1387
        %v1425 = vunpack.c.l.b16 %v1388
        %v1426 = vunpack.c.l.b16 %v1389
        %v1427 = vunpack.c.l.b16 %v1390
        %v1428 = vunpack.c.l.b16 %v1391
        %v1429 = vunpack.c.l.b16 %v1392
        %v1430 = vunpack.c.l.b16 %v1393
        %v1431 = vunpack.c.l.b16 %v1394
        %v1432 = vunpack.c.l.b16 %v1395
        %v1433 = vunpack.c.l.b16 %v1396
        %v1434 = vunpack.c.l.b16 %v1397
        %v1435 = vunpack.c.l.b16 %v1398
        %v1436 = vunpack.c.l.b16 %v1399
        %v1437 = vunpack.c.l.b16 %v1400
        %v1438 = vunpack.c.l.b16 %v1401
        %v1439 = vunpack.c.l.b16 %v1402
        %v1440 = vpack.c.b16 %v1425, %v1424
        %v1441 = vpack.c.b16 %v1427, %v1426
        %v1442 = vpack.c.b16 %v1429, %v1428
        %v1443 = vpack.c.b16 %v1431, %v1430
        %v1444 = vpack.c.b16 %v1433, %v1432
        %v1445 = vpack.c.b16 %v1435, %v1434
        %v1446 = vpack.c.b16 %v1437, %v1436
        %v1447 = vpack.c.b16 %v1439, %v1438
        %1456 = vmatpush.bf16.msra.mxu0 %v1447
        %1457 = vmatpush.bf16.msra.mxu0 %v1446
        %1458 = vmatpush.bf16.msra.mxu0 %v1445
        %1459 = vmatpush.bf16.msra.mxu0 %v1444
        %1460 = vmatpush.bf16.msra.mxu0 %v1443
        %1461 = vmatpush.bf16.msra.mxu0 %v1442
        %1462 = vmatpush.bf16.msra.mxu0 %v1441
        %1463 = vmatpush.bf16.msra.mxu0 %v1440
        %1464 = vmatmul.bf16.gmra.mxu0 %v1385
        %v1465 = vpop.f32.mrf.mxu0
        %v1466 = vadd.f32 %v1406, %v1465
        %v1467 = vpop.f32.mrf.mxu0
        %1468 = vdwg.mxu0
        %1470 = vrot.lane.b32.xlu0 %v1466, 120
        %v1471 = vpop.permute.xlu0 %1470
        %1473 = vrot.lane.b32.xlu0 %v1466, 112
        %v1474 = vpop.permute.xlu0 %1473
        %1476 = vrot.lane.b32.xlu0 %v1466, 104
        %v1477 = vpop.permute.xlu0 %1476
        %v1479 = vpack.c.bf16 %v1466, %v1466
        %v1480 = vpack.c.bf16 %v1471, %v1471
        %v1481 = vpack.c.bf16 %v1474, %v1474
        %v1482 = vpack.c.bf16 %v1477, %v1477
        %v1484 = vunpack.c.l.b16 %v1479
        %v1485 = vpack.c.b16 %v1484, %v1484
        %1486 = vrot.lane.b32.xlu0 %v1485, 96
        %v1487 = vpop.permute.xlu0 %1486
        %v1489 = vsel %vm829, %v1479, 0
        %v1492 = vsel %vm829, %v1487, 0
        %1494 = vmatpush.bf16.xpose.msra.mxu0 0
        %1495 = vmatpush.bf16.xpose.msra.mxu0 0
        %1496 = vmatpush.bf16.xpose.msra.mxu0 0
        %1497 = vmatpush.bf16.xpose.msra.mxu0 0
        %1498 = vmatpush.bf16.xpose.msra.mxu0 0
        %1499 = vmatpush.bf16.xpose.msra.mxu0 0
        %1500 = vmatpush.bf16.xpose.msra.mxu0 0
        %1501 = vmatpush.bf16.xpose.msra.mxu0 %v1492
        %1502 = vmatmul.bf16.gmra.mxu0 %v1489
        %v1503 = vpop.f32.mrf.mxu0
        %v1504 = vadd.f32 %v822, %v1503
        %v1505 = vpop.f32.mrf.mxu0
        %1506 = vdwg.mxu0
        %v1508 = vunpack.c.l.b16 %v1480
        %v1509 = vpack.c.b16 %v1508, %v1508
        %1510 = vrot.lane.b32.xlu0 %v1509, 96
        %v1511 = vpop.permute.xlu0 %1510
        %v1513 = vsel %vm829, %v1480, 0
        %v1516 = vsel %vm829, %v1511, 0
        %1518 = vmatpush.bf16.xpose.msra.mxu0 0
        %1519 = vmatpush.bf16.xpose.msra.mxu0 0
        %1520 = vmatpush.bf16.xpose.msra.mxu0 0
        %1521 = vmatpush.bf16.xpose.msra.mxu0 0
        %1522 = vmatpush.bf16.xpose.msra.mxu0 0
        %1523 = vmatpush.bf16.xpose.msra.mxu0 0
        %1524 = vmatpush.bf16.xpose.msra.mxu0 0
        %1525 = vmatpush.bf16.xpose.msra.mxu0 %v1516
        %1526 = vmatmul.bf16.gmra.mxu0 %v1513
        %v1527 = vpop.f32.mrf.mxu0
        %v1528 = vadd.f32 %v822, %v1527
        %v1529 = vpop.f32.mrf.mxu0
        %1530 = vdwg.mxu0
        %v1532 = vunpack.c.l.b16 %v1481
        %v1533 = vpack.c.b16 %v1532, %v1532
        %1534 = vrot.lane.b32.xlu0 %v1533, 96
        %v1535 = vpop.permute.xlu0 %1534
        %v1537 = vsel %vm829, %v1481, 0
        %v1540 = vsel %vm829, %v1535, 0
        %1542 = vmatpush.bf16.xpose.msra.mxu0 0
        %1543 = vmatpush.bf16.xpose.msra.mxu0 0
        %1544 = vmatpush.bf16.xpose.msra.mxu0 0
        %1545 = vmatpush.bf16.xpose.msra.mxu0 0
        %1546 = vmatpush.bf16.xpose.msra.mxu0 0
        %1547 = vmatpush.bf16.xpose.msra.mxu0 0
        %1548 = vmatpush.bf16.xpose.msra.mxu0 0
        %1549 = vmatpush.bf16.xpose.msra.mxu0 %v1540
        %1550 = vmatmul.bf16.gmra.mxu0 %v1537
        %v1551 = vpop.f32.mrf.mxu0
        %v1552 = vadd.f32 %v822, %v1551
        %v1553 = vpop.f32.mrf.mxu0
        %1554 = vdwg.mxu0
        %v1556 = vunpack.c.l.b16 %v1482
        %v1557 = vpack.c.b16 %v1556, %v1556
        %1558 = vrot.lane.b32.xlu0 %v1557, 96
        %v1559 = vpop.permute.xlu0 %1558
        %v1561 = vsel %vm829, %v1482, 0
        %v1564 = vsel %vm829, %v1559, 0
        %1566 = vmatpush.bf16.xpose.msra.mxu0 0
        %1567 = vmatpush.bf16.xpose.msra.mxu0 0
        %1568 = vmatpush.bf16.xpose.msra.mxu0 0
        %1569 = vmatpush.bf16.xpose.msra.mxu0 0
        %1570 = vmatpush.bf16.xpose.msra.mxu0 0
        %1571 = vmatpush.bf16.xpose.msra.mxu0 0
        %1572 = vmatpush.bf16.xpose.msra.mxu0 0
        %1573 = vmatpush.bf16.xpose.msra.mxu0 %v1564
        %1574 = vmatmul.bf16.gmra.mxu0 %v1561
        %v1575 = vpop.f32.mrf.mxu0
        %v1576 = vadd.f32 %v822, %v1575
        %v1577 = vpop.f32.mrf.mxu0
        %1578 = vdwg.mxu0
        %v1579 = vsel %vm829, %v1504, -inf
        %1580 = vmax.xlane.f32.xlu0 %v1579
        %v1581 = vpop.xlane.xlu0 %1580
        %v1582 = vsel %vm829, %v1528, -inf
        %1583 = vmax.xlane.f32.xlu0 %v1582
        %v1584 = vpop.xlane.xlu0 %1583
        %v1585 = vsel %vm829, %v1552, -inf
        %1586 = vmax.xlane.f32.xlu0 %v1585
        %v1587 = vpop.xlane.xlu0 %1586
        %v1588 = vsel %vm829, %v1576, -inf
        %1589 = vmax.xlane.f32.xlu0 %v1588
        %v1590 = vpop.xlane.xlu0 %1589
        %v1591 = vsub.f32 %v1504, %v1581
        %v1592 = vsub.f32 %v1528, %v1584
        %v1593 = vsub.f32 %v1552, %v1587
        %v1594 = vsub.f32 %v1576, %v1590
        %v1595 = vmul.f32 %v1591, 1.442695
        %v1596 = vpow.pop %v1595
        %v1597 = vmul.f32 %v1592, 1.442695
        %v1598 = vpow.pop %v1597
        %v1599 = vmul.f32 %v1593, 1.442695
        %v1600 = vpow.pop %v1599
        %v1601 = vmul.f32 %v1594, 1.442695
        %v1602 = vpow.pop %v1601
        %v1603 = vsel %vm829, %v1596, 0.0
        %1604 = vadd.xlane.f32.xlu0 %v1603
        %v1605 = vpop.xlane.xlu0 %1604
        %v1606 = vsel %vm829, %v1598, 0.0
        %1607 = vadd.xlane.f32.xlu0 %v1606
        %v1608 = vpop.xlane.xlu0 %1607
        %v1609 = vsel %vm829, %v1600, 0.0
        %1610 = vadd.xlane.f32.xlu0 %v1609
        %v1611 = vpop.xlane.xlu0 %1610
        %v1612 = vsel %vm829, %v1602, 0.0
        %1613 = vadd.xlane.f32.xlu0 %v1612
        %v1614 = vpop.xlane.xlu0 %1613
        %v1615 = vrcp.pop %v1605
        %v1616 = vrcp.pop %v1608
        %v1617 = vrcp.pop %v1611
        %v1618 = vrcp.pop %v1614
        %v1619 = vmul.f32 %v1596, %v1615
        %v1620 = vmul.f32 %v1598, %v1616
        %v1621 = vmul.f32 %v1600, %v1617
        %v1622 = vmul.f32 %v1602, %v1618
        %v1623 = vpack.c.bf16 %v1619, %v1619
        %v1624 = vpack.c.bf16 %v1620, %v1620
        %v1625 = vpack.c.bf16 %v1621, %v1621
        %v1626 = vpack.c.bf16 %v1622, %v1622
        %1627 = vrot.lane.b32.xlu0 %v1485, 64
        %v1628 = vpop.permute.xlu0 %1627
        %v1630 = vsel %vm829, %v1623, 0
        %v1633 = vsel %vm974, %v1628, 0
        %1635 = vmatpush.bf16.msra.mxu0 0
        %1636 = vmatpush.bf16.msra.mxu0 0
        %1637 = vmatpush.bf16.msra.mxu0 0
        %1638 = vmatpush.bf16.msra.mxu0 0
        %1639 = vmatpush.bf16.msra.mxu0 0
        %1640 = vmatpush.bf16.msra.mxu0 0
        %1641 = vmatpush.bf16.msra.mxu0 0
        %1642 = vmatpush.bf16.msra.mxu0 %v1633
        %1643 = vmatmul.bf16.gmra.mxu0 %v1630
        %v1644 = vpop.f32.mrf.mxu0
        %v1645 = vadd.f32 0.0, %v1644
        %v1646 = vpop.f32.mrf.mxu0
        %1647 = vdwg.mxu0
        %1648 = vrot.lane.b32.xlu0 %v1509, 64
        %v1649 = vpop.permute.xlu0 %1648
        %v1651 = vsel %vm829, %v1624, 0
        %v1654 = vsel %vm974, %v1649, 0
        %1656 = vmatpush.bf16.msra.mxu0 0
        %1657 = vmatpush.bf16.msra.mxu0 0
        %1658 = vmatpush.bf16.msra.mxu0 0
        %1659 = vmatpush.bf16.msra.mxu0 0
        %1660 = vmatpush.bf16.msra.mxu0 0
        %1661 = vmatpush.bf16.msra.mxu0 0
        %1662 = vmatpush.bf16.msra.mxu0 0
        %1663 = vmatpush.bf16.msra.mxu0 %v1654
        %1664 = vmatmul.bf16.gmra.mxu0 %v1651
        %v1665 = vpop.f32.mrf.mxu0
        %v1666 = vadd.f32 0.0, %v1665
        %v1667 = vpop.f32.mrf.mxu0
        %1668 = vdwg.mxu0
        %1669 = vrot.lane.b32.xlu0 %v1533, 64
        %v1670 = vpop.permute.xlu0 %1669
        %v1672 = vsel %vm829, %v1625, 0
        %v1675 = vsel %vm974, %v1670, 0
        %1677 = vmatpush.bf16.msra.mxu0 0
        %1678 = vmatpush.bf16.msra.mxu0 0
        %1679 = vmatpush.bf16.msra.mxu0 0
        %1680 = vmatpush.bf16.msra.mxu0 0
        %1681 = vmatpush.bf16.msra.mxu0 0
        %1682 = vmatpush.bf16.msra.mxu0 0
        %1683 = vmatpush.bf16.msra.mxu0 0
        %1684 = vmatpush.bf16.msra.mxu0 %v1675
        %1685 = vmatmul.bf16.gmra.mxu0 %v1672
        %v1686 = vpop.f32.mrf.mxu0
        %v1687 = vadd.f32 0.0, %v1686
        %v1688 = vpop.f32.mrf.mxu0
        %1689 = vdwg.mxu0
        %1690 = vrot.lane.b32.xlu0 %v1557, 64
        %v1691 = vpop.permute.xlu0 %1690
        %v1693 = vsel %vm829, %v1626, 0
        %v1696 = vsel %vm974, %v1691, 0
        %1698 = vmatpush.bf16.msra.mxu0 0
        %1699 = vmatpush.bf16.msra.mxu0 0
        %1700 = vmatpush.bf16.msra.mxu0 0
        %1701 = vmatpush.bf16.msra.mxu0 0
        %1702 = vmatpush.bf16.msra.mxu0 0
        %1703 = vmatpush.bf16.msra.mxu0 0
        %1704 = vmatpush.bf16.msra.mxu0 0
        %1705 = vmatpush.bf16.msra.mxu0 %v1696
        %1706 = vmatmul.bf16.gmra.mxu0 %v1693
        %v1707 = vpop.f32.mrf.mxu0
        %v1708 = vadd.f32 0.0, %v1707
        %v1709 = vpop.f32.mrf.mxu0
        %1710 = vdwg.mxu0
        %v1711 = vpack.c.bf16 %v1645, %v1645
        %v1712 = vpack.c.bf16 %v1666, %v1666
        %v1713 = vpack.c.bf16 %v1687, %v1687
        %v1714 = vpack.c.bf16 %v1708, %v1708
        %s1715 = scalar_lea.vmem [#allocation11], 16
        %v1716 = vld [vmem:[%s1715] sm:$0xf]
        %v1717 = vld [vmem:[%s1715 + $0x4] sm:$0xf]
        %v1718 = vld [vmem:[%s1715 + $0x8] sm:$0xf]
        %v1719 = vld [vmem:[%s1715 + $0xc] sm:$0xf]
        %v1721 = vsel %vm829, %v1711, 0
        %v1724 = vsel %vm974, %v1716, 0
        %1726 = vmatpush.bf16.msra.mxu0 0
        %1727 = vmatpush.bf16.msra.mxu0 0
        %1728 = vmatpush.bf16.msra.mxu0 0
        %1729 = vmatpush.bf16.msra.mxu0 0
        %1730 = vmatpush.bf16.msra.mxu0 0
        %1731 = vmatpush.bf16.msra.mxu0 0
        %1732 = vmatpush.bf16.msra.mxu0 0
        %1733 = vmatpush.bf16.msra.mxu0 %v1724
        %1734 = vmatmul.bf16.gmra.mxu0 %v1721
        %v1735 = vpop.f32.mrf.mxu0
        %v1736 = vadd.f32 0.0, %v1735
        %v1737 = vpop.f32.mrf.mxu0
        %1738 = vdwg.mxu0
        %v1740 = vsel %vm829, %v1712, 0
        %v1743 = vsel %vm974, %v1717, 0
        %1745 = vmatpush.bf16.msra.mxu0 0
        %1746 = vmatpush.bf16.msra.mxu0 0
        %1747 = vmatpush.bf16.msra.mxu0 0
        %1748 = vmatpush.bf16.msra.mxu0 0
        %1749 = vmatpush.bf16.msra.mxu0 0
        %1750 = vmatpush.bf16.msra.mxu0 0
        %1751 = vmatpush.bf16.msra.mxu0 0
        %1752 = vmatpush.bf16.msra.mxu0 %v1743
        %1753 = vmatmul.bf16.gmra.mxu0 %v1740
        %v1754 = vpop.f32.mrf.mxu0
        %v1755 = vadd.f32 0.0, %v1754
        %v1756 = vpop.f32.mrf.mxu0
        %1757 = vdwg.mxu0
        %v1759 = vsel %vm829, %v1713, 0
        %v1762 = vsel %vm974, %v1718, 0
        %1764 = vmatpush.bf16.msra.mxu0 0
        %1765 = vmatpush.bf16.msra.mxu0 0
        %1766 = vmatpush.bf16.msra.mxu0 0
        %1767 = vmatpush.bf16.msra.mxu0 0
        %1768 = vmatpush.bf16.msra.mxu0 0
        %1769 = vmatpush.bf16.msra.mxu0 0
        %1770 = vmatpush.bf16.msra.mxu0 0
        %1771 = vmatpush.bf16.msra.mxu0 %v1762
        %1772 = vmatmul.bf16.gmra.mxu0 %v1759
        %v1773 = vpop.f32.mrf.mxu0
        %v1774 = vadd.f32 0.0, %v1773
        %v1775 = vpop.f32.mrf.mxu0
        %1776 = vdwg.mxu0
        %v1778 = vsel %vm829, %v1714, 0
        %v1781 = vsel %vm974, %v1719, 0
        %1783 = vmatpush.bf16.msra.mxu0 0
        %1784 = vmatpush.bf16.msra.mxu0 0
        %1785 = vmatpush.bf16.msra.mxu0 0
        %1786 = vmatpush.bf16.msra.mxu0 0
        %1787 = vmatpush.bf16.msra.mxu0 0
        %1788 = vmatpush.bf16.msra.mxu0 0
        %1789 = vmatpush.bf16.msra.mxu0 0
        %1790 = vmatpush.bf16.msra.mxu0 %v1781
        %1791 = vmatmul.bf16.gmra.mxu0 %v1778
        %v1792 = vpop.f32.mrf.mxu0
        %v1793 = vadd.f32 0.0, %v1792
        %v1794 = vpop.f32.mrf.mxu0
        %1795 = vdwg.mxu0
        %v1796 = vadd.f32 %v1736, %v1755
        %v1797 = vadd.f32 %v1796, %v1774
        %v1798 = vadd.f32 %v1797, %v1793
        %s1799 = scalar_lea.vmem %s7, 1
        %v1800 = vld [vmem:[%s1799] sm:$0x1]
        %v1802 = vperm.slane %v1800, 0
        %v1804 = vadd.f32 %v1798, %v1802
        %v1805 = vadd.f32 %v1384, %v1804
        %s1806 = scalar_lea.vmem %s8, 1
        %v1807 = vld [vmem:[%s1806] sm:$0x1]
        %s1808 = scalar_lea.vmem %s9, 1
        %v1809 = vld [vmem:[%s1808] sm:$0x1]
        %v1810 = vmul.f32 %v1805, %v690
        %1811 = vadd.xlane.f32.xlu0 %v1810
        %v1812 = vpop.xlane.xlu0 %1811
        %v1813 = vmul.f32 %v1812, 0.03125
        %v1814 = vsub.f32 %v1805, %v1813
        %v1815 = vmul.f32 %v1814, %v690
        %v1816 = vmul.f32 %v1815, %v1815
        %1817 = vadd.xlane.f32.xlu0 %v1816
        %v1818 = vpop.xlane.xlu0 %1817
        %v1819 = vmul.f32 %v1818, 0.03125
        %v1820 = vadd.f32 %v1819, 1e-05
        %v1821 = vrsqrt.pop %v1820
        %v1822 = vmul.f32 %v1821, %v1820
        %v1823 = vmul.f32 %v1822, %v1821
        %v1824 = vmul.f32 0.5, %v1823
        %v1825 = vsub.f32 1.5, %v1824
        %v1826 = vmul.f32 %v1821, %v1825
        %vm1827 = vweird.f32 %v1820
        %vm1828 = vweird.f32 %v1821
        %vm1829 = vmor %vm1827, %vm1828
        %v1830 = vsel %vm1829, %v1821, %v1826
        %v1831 = vmul.f32 %v1815, %v1830
        %v1833 = vperm.slane %v1807, 0
        %v1835 = vmul.f32 %v1831, %v1833
        %v1837 = vperm.slane %v1809, 0
        %v1839 = vadd.f32 %v1835, %v1837
        %v1840 = vpack.c.bf16 %v1839, %v1839
        %s1841 = scalar_lea.vmem [#allocation13], 64
        %v1842 = vld [vmem:[%s1841] sm:$0xf]
        %v1843 = vld [vmem:[%s1841 + $0x4] sm:$0xf]
        %v1844 = vld [vmem:[%s1841 + $0x8] sm:$0xf]
        %v1845 = vld [vmem:[%s1841 + $0xc] sm:$0xf]
        %v1846 = vld [vmem:[%s1841 + $0x10] sm:$0xf]
        %v1847 = vld [vmem:[%s1841 + $0x14] sm:$0xf]
        %v1848 = vld [vmem:[%s1841 + $0x18] sm:$0xf]
        %v1849 = vld [vmem:[%s1841 + $0x1c] sm:$0xf]
        %v1850 = vld [vmem:[%s1841 + $0x20] sm:$0xf]
        %v1851 = vld [vmem:[%s1841 + $0x24] sm:$0xf]
        %v1852 = vld [vmem:[%s1841 + $0x28] sm:$0xf]
        %v1853 = vld [vmem:[%s1841 + $0x2c] sm:$0xf]
        %v1854 = vld [vmem:[%s1841 + $0x30] sm:$0xf]
        %v1855 = vld [vmem:[%s1841 + $0x34] sm:$0xf]
        %v1856 = vld [vmem:[%s1841 + $0x38] sm:$0xf]
        %v1857 = vld [vmem:[%s1841 + $0x3c] sm:$0xf]
        %s1858 = scalar_lea.vmem %s11, 1
        %v1859 = vld [vmem:[%s1858] sm:$0x1]
        %v1861 = vperm.slane %v1859, 0
        %v1879 = vunpack.c.l.b16 %v1842
        %v1880 = vunpack.c.l.b16 %v1843
        %v1881 = vunpack.c.l.b16 %v1844
        %v1882 = vunpack.c.l.b16 %v1845
        %v1883 = vunpack.c.l.b16 %v1846
        %v1884 = vunpack.c.l.b16 %v1847
        %v1885 = vunpack.c.l.b16 %v1848
        %v1886 = vunpack.c.l.b16 %v1849
        %v1887 = vunpack.c.l.b16 %v1850
        %v1888 = vunpack.c.l.b16 %v1851
        %v1889 = vunpack.c.l.b16 %v1852
        %v1890 = vunpack.c.l.b16 %v1853
        %v1891 = vunpack.c.l.b16 %v1854
        %v1892 = vunpack.c.l.b16 %v1855
        %v1893 = vunpack.c.l.b16 %v1856
        %v1894 = vunpack.c.l.b16 %v1857
        %v1895 = vpack.c.b16 %v1880, %v1879
        %v1896 = vpack.c.b16 %v1882, %v1881
        %v1897 = vpack.c.b16 %v1884, %v1883
        %v1898 = vpack.c.b16 %v1886, %v1885
        %v1899 = vpack.c.b16 %v1888, %v1887
        %v1900 = vpack.c.b16 %v1890, %v1889
        %v1901 = vpack.c.b16 %v1892, %v1891
        %v1902 = vpack.c.b16 %v1894, %v1893
        %1911 = vmatpush.bf16.msra.mxu0 %v1902
        %1912 = vmatpush.bf16.msra.mxu0 %v1901
        %1913 = vmatpush.bf16.msra.mxu0 %v1900
        %1914 = vmatpush.bf16.msra.mxu0 %v1899
        %1915 = vmatpush.bf16.msra.mxu0 %v1898
        %1916 = vmatpush.bf16.msra.mxu0 %v1897
        %1917 = vmatpush.bf16.msra.mxu0 %v1896
        %1918 = vmatpush.bf16.msra.mxu0 %v1895
        %1919 = vmatmul.bf16.gmra.mxu0 %v1840
        %v1920 = vpop.f32.mrf.mxu0
        %v1921 = vadd.f32 %v1861, %v1920
        %v1922 = vpop.f32.mrf.mxu0
        %1923 = vdwg.mxu0
        %v1924 = vmul.f32 %v1921, 0.5
        %v1925 = vmul.f32 %v1921, 0.044715
        %v1926 = vmul.f32 %v1925, %v1921
        %v1927 = vmul.f32 %v1926, %v1921
        %v1928 = vadd.f32 %v1921, %v1927
        %v1929 = vmul.f32 %v1928, 0.7978846
        %v1930 = vtanh.pop %v1929
        %v1931 = vadd.f32 %v1930, 1.0
        %v1932 = vmul.f32 %v1924, %v1931
        %v1933 = vpack.c.bf16 %v1932, %v1932
        %s1934 = scalar_lea.vmem [#allocation14], 64
        %v1935 = vld [vmem:[%s1934] sm:$0xf]
        %v1936 = vld [vmem:[%s1934 + $0x4] sm:$0xf]
        %v1937 = vld [vmem:[%s1934 + $0x8] sm:$0xf]
        %v1938 = vld [vmem:[%s1934 + $0xc] sm:$0xf]
        %v1939 = vld [vmem:[%s1934 + $0x10] sm:$0xf]
        %v1940 = vld [vmem:[%s1934 + $0x14] sm:$0xf]
        %v1941 = vld [vmem:[%s1934 + $0x18] sm:$0xf]
        %v1942 = vld [vmem:[%s1934 + $0x1c] sm:$0xf]
        %v1943 = vld [vmem:[%s1934 + $0x20] sm:$0xf]
        %v1944 = vld [vmem:[%s1934 + $0x24] sm:$0xf]
        %v1945 = vld [vmem:[%s1934 + $0x28] sm:$0xf]
        %v1946 = vld [vmem:[%s1934 + $0x2c] sm:$0xf]
        %v1947 = vld [vmem:[%s1934 + $0x30] sm:$0xf]
        %v1948 = vld [vmem:[%s1934 + $0x34] sm:$0xf]
        %v1949 = vld [vmem:[%s1934 + $0x38] sm:$0xf]
        %v1950 = vld [vmem:[%s1934 + $0x3c] sm:$0xf]
        %s1951 = scalar_lea.vmem %s13, 1
        %v1952 = vld [vmem:[%s1951] sm:$0x1]
        %v1954 = vperm.slane %v1952, 0
        %v1972 = vunpack.c.l.b16 %v1935
        %v1973 = vunpack.c.l.b16 %v1936
        %v1974 = vunpack.c.l.b16 %v1937
        %v1975 = vunpack.c.l.b16 %v1938
        %v1976 = vunpack.c.l.b16 %v1939
        %v1977 = vunpack.c.l.b16 %v1940
        %v1978 = vunpack.c.l.b16 %v1941
        %v1979 = vunpack.c.l.b16 %v1942
        %v1980 = vunpack.c.l.b16 %v1943
        %v1981 = vunpack.c.l.b16 %v1944
        %v1982 = vunpack.c.l.b16 %v1945
        %v1983 = vunpack.c.l.b16 %v1946
        %v1984 = vunpack.c.l.b16 %v1947
        %v1985 = vunpack.c.l.b16 %v1948
        %v1986 = vunpack.c.l.b16 %v1949
        %v1987 = vunpack.c.l.b16 %v1950
        %v1988 = vpack.c.b16 %v1973, %v1972
        %v1989 = vpack.c.b16 %v1975, %v1974
        %v1990 = vpack.c.b16 %v1977, %v1976
        %v1991 = vpack.c.b16 %v1979, %v1978
        %v1992 = vpack.c.b16 %v1981, %v1980
        %v1993 = vpack.c.b16 %v1983, %v1982
        %v1994 = vpack.c.b16 %v1985, %v1984
        %v1995 = vpack.c.b16 %v1987, %v1986
        %2004 = vmatpush.bf16.msra.mxu0 %v1995
        %2005 = vmatpush.bf16.msra.mxu0 %v1994
        %2006 = vmatpush.bf16.msra.mxu0 %v1993
        %2007 = vmatpush.bf16.msra.mxu0 %v1992
        %2008 = vmatpush.bf16.msra.mxu0 %v1991
        %2009 = vmatpush.bf16.msra.mxu0 %v1990
        %2010 = vmatpush.bf16.msra.mxu0 %v1989
        %2011 = vmatpush.bf16.msra.mxu0 %v1988
        %2012 = vmatmul.bf16.gmra.mxu0 %v1933
        %v2013 = vpop.f32.mrf.mxu0
        %v2014 = vadd.f32 %v1954, %v2013
        %v2015 = vpop.f32.mrf.mxu0
        %2016 = vdwg.mxu0
        %v2017 = vadd.f32 %v1839, %v2014
        %s2018 = scalar_lea.vmem [#allocation16], 1
        %v2019 = vld [vmem:[%s2018] sm:$0x1]
        %s2020 = scalar_lea.vmem %s15, 1
        %v2021 = vld [vmem:[%s2020] sm:$0x1]
        %v2022 = vmul.f32 %v2017, %v690
        %2023 = vadd.xlane.f32.xlu0 %v2022
        %v2024 = vpop.xlane.xlu0 %2023
        %v2025 = vmul.f32 %v2024, 0.03125
        %v2026 = vsub.f32 %v2017, %v2025
        %v2027 = vmul.f32 %v2026, %v690
        %v2028 = vmul.f32 %v2027, %v2027
        %2029 = vadd.xlane.f32.xlu0 %v2028
        %v2030 = vpop.xlane.xlu0 %2029
        %v2031 = vmul.f32 %v2030, 0.03125
        %v2032 = vadd.f32 %v2031, 1e-05
        %v2033 = vrsqrt.pop %v2032
        %v2034 = vmul.f32 %v2033, %v2032
        %v2035 = vmul.f32 %v2034, %v2033
        %v2036 = vmul.f32 0.5, %v2035
        %v2037 = vsub.f32 1.5, %v2036
        %v2038 = vmul.f32 %v2033, %v2037
        %vm2039 = vweird.f32 %v2032
        %vm2040 = vweird.f32 %v2033
        %vm2041 = vmor %vm2039, %vm2040
        %v2042 = vsel %vm2041, %v2033, %v2038
        %v2043 = vmul.f32 %v2027, %v2042
        %v2045 = vperm.slane %v2019, 0
        %v2047 = vmul.f32 %v2043, %v2045
        %v2049 = vperm.slane %v2021, 0
        %v2051 = vadd.f32 %v2047, %v2049
        %2052 = vst [vmem:[%s684] sm:$0xff] %v2051
        %s2053 = sand.u32 %s393, 1
        %s2054 = scalar_lea.sflag [#allocation4], %s2053
        %s2055 = sand.u32 %s393, 1
        %s2056 = smul.addr %s2055, 8
        %s2057 = scalar_lea.vmem [#allocation17], %s2056
        // Predicated region
        $region121: #{tpu_custom_call.1} parent=83 // pred_check
          %p2058 = pneg %p403
        $region122: #{tpu_custom_call.1} parent=83 // pred_check_branch
          %2060 = sbr.rel (%p2058) target = $region124
        $region123: #{tpu_custom_call.1} parent=83 // pred_region
          %2062 = vsyncadd %s2054, 0
          %s2063 = smul.addr %s39, 8
          %s2064 = scalar_lea.hbm %s16, %s2063
          %s2066 = sshll.u32 %s2057, 4
          %s2067 = int_to_ptr.vmem [resolvable:$true] %s2066
          %s2068 = sshll.u32 %s2064, 4
          %s2069 = int_to_ptr.hbm [resolvable:$true] %s2068
          %2071 = dma.vmem_to_hbm [thread:$0]  %s2067, 128, %s2069, %s2054
        $region124: #{tpu_custom_call.1} parent=83 // pred_fallthru
          _
      $region84: #{tpu_custom_call.1} parent=5 // pred_fallthru
        _
      %p2072 = scmp.le.s32.totalorder 2, %s34
      // Predicated region
      $region125: #{tpu_custom_call.1} parent=5 // pred_check
        %p2073 = pneg %p2072
      $region126: #{tpu_custom_call.1} parent=5 // pred_check_branch
        %2075 = sbr.rel (%p2073) target = $region128
      $region127: #{tpu_custom_call.1} parent=5 // pred_region
        %s2076 = ssub.s32 %s34, 2
        // Predicated region
        $region129: #{tpu_custom_call.1} parent=127 // pred_check
          %p2077 = pneg %p409
        $region130: #{tpu_custom_call.1} parent=127 // pred_check_branch
          %2079 = sbr.rel (%p2077) target = $region132
        $region131: #{tpu_custom_call.1} parent=127 // pred_region
          %s2080 = sand.u32 %s394, 1
          %s2081 = scalar_lea.sflag [#allocation4], %s2080
          %s2082 = sand.u32 %s394, 1
          %s2083 = smul.addr %s2082, 8
          %s2084 = scalar_lea.vmem [#allocation17], %s2083
          %2086 = dma.done %s2081, 128
        $region132: #{tpu_custom_call.1} parent=127 // pred_fallthru
          _
      $region128: #{tpu_custom_call.1} parent=5 // pred_fallthru
        _
    $region6: #{tpu_custom_call.1} parent=1 // loop_footer
      %s38 = sadd.s32 1, %s34
    $region7: #{tpu_custom_call.1} parent=1 // loop_footer_branch
      %33 = sbr.rel target = $region3
    $region8: #{tpu_custom_call.1} parent=1 // loop_exit
      _
    %2087 = vsyncpa [#allocation3], 1
    %s2088 = scalar_lea.sflag [#allocation3], 1
    %2089 = vsyncpa %s2088, 1
    %2090 = vsyncpa [#allocation6], 1
    %s2091 = scalar_lea.sflag [#allocation6], 1
    %2092 = vsyncpa %s2091, 1
    %2093 = vsyncpa [#allocation9], 1
    %2094 = vsyncpa [#allocation12], 1
    %2095 = vsyncpa [#allocation15], 1
    %2096 = vsyncpa [#allocation4], 1
    %s2097 = scalar_lea.sflag [#allocation4], 1
    %2098 = vsyncpa %s2097, 1

</llo_original>
